<compile_context>
chip_gen: v5e
topology: v5e:2x2
jax: 0.10.0
libtpu: 0.0.40
codegen_flags: <defaults>
</compile_context>

<pallas_src>
import functools

import jax
import jax.numpy as jnp
from jax.experimental import pallas as pl
from jax.experimental.pallas import tpu as pltpu

EPS_LN = 1e-6            # timm ViT LayerNorm eps
EPS_L2 = 1e-6            # L2N eps
DTYPE = jnp.bfloat16     # weights / residual stream dtype


# ----------------------------------------------------------------------------
# helpers
# ----------------------------------------------------------------------------
def _round_up(x, m):
    return (x + m - 1) // m * m


def _weight_budget_bytes():
    """VMEM budget for a resident (double-buffer counted) weight block."""
    try:
        cap = pltpu.get_tpu_info().vmem_capacity_bytes
    except Exception:
        cap = 64 << 20            # assume the smallest per-core VMEM (v7x)
    return int(min(cap // 3, 40 << 20))


def _vmem_limit(footprint_bytes):
    """Per-call scoped-VMEM limit: real footprint + slack, clamped."""
    return int(min(max(footprint_bytes + (4 << 20), 16 << 20), 128 << 20))


def _softmax_exp_dtype():
    """bf16 exp on v6e/v7x (bf16 EUP path, ~2x f32 rate); f32 on v5e/older."""
    try:
        kind = jax.devices()[0].device_kind.lower()
    except Exception:
        return jnp.float32
    if ("v6" in kind) or ("v7" in kind):
        return jnp.bfloat16
    return jnp.float32


def _choose_tk(k, pref):
    if k <= pref or k % 128 != 0:
        return k                              # full-K block
    t = (pref // 128) * 128
    while k % t:
        t -= 128
    return max(t, 128)


# ----------------------------------------------------------------------------
# fused linear kernel:
#   [LN] -> matmul (optionally K-accumulated) -> +bias [-> GELU] [-> +residual]
# ----------------------------------------------------------------------------
def _fused_linear_kernel(*refs, nk, nj, activation, fuse_ln, has_res):
    it = iter(refs)
    x_ref = next(it)
    w_ref = next(it)
    b_ref = next(it)
    g_ref = next(it) if fuse_ln else None
    beta_ref = next(it) if fuse_ln else None
    r_ref = next(it) if has_res else None
    o_ref = next(it)
    acc_ref = next(it) if nk > 1 else None
    xn_ref = next(it) if (fuse_ln and nj > 1) else None

    def layernorm():
        xf = x_ref[...].astype(jnp.float32)
        mu = jnp.mean(xf, axis=-1, keepdims=True)
        var = jnp.mean(jnp.square(xf - mu), axis=-1, keepdims=True)
        xn = (xf - mu) * jax.lax.rsqrt(var + EPS_LN)
        return (xn * g_ref[...] + beta_ref[...]).astype(w_ref.dtype)

    def epilogue(y):
        y = y + b_ref[...]
        if activation == "gelu":
            # tanh-approx GELU: EUP slot, co-issues with MXU/VPU (exact erf is
            # a long VPU polynomial over the whole [tm, tn] f32 tile).
            y = jax.nn.gelu(y, approximate=True)
        if has_res:
            y = y + r_ref[...].astype(jnp.float32)
        o_ref[...] = y.astype(o_ref.dtype)

    if fuse_ln:
        if nj > 1:
            # Cache the normalized x block for j > 0 (avoid recomputing LN
            # stats once per N tile).
            @pl.when(pl.program_id(1) == 0)
            def _():
                xn_ref[...] = layernorm()
            x = xn_ref[...]
        else:
            x = layernorm()
    else:
        x = x_ref[...]

    if nk == 1:
        # No accumulator round trip: dot -> epilogue -> store.
        epilogue(jnp.dot(x, w_ref[...], preferred_element_type=jnp.float32))
    else:
        kk = pl.program_id(2)

        @pl.when(kk == 0)
        def _():
            acc_ref[...] = jnp.zeros_like(acc_ref)

        acc_ref[...] += jnp.dot(x, w_ref[...], preferred_element_type=jnp.float32)

        @pl.when(kk == nk - 1)
        def _():
            epilogue(acc_ref[...])


def fused_linear(x, w, b, *, ln=None, residual=None, activation=None,
                 out_dtype=DTYPE, tm_pref=256, tn_pref=512, tk_pref=512):
    """y = act(LN?(x) @ w + b) + residual?   (f32 matmul accumulation)."""
    m, k = x.shape
    kw, n = w.shape
    assert k == kw
    fuse_ln = ln is not None
    has_res = residual is not None
    esz = jnp.dtype(DTYPE).itemsize

    # ---- M tiling: MXU-aligned tile, pad M up (no divisor search) ----------
    if m <= tm_pref:
        tm = _round_up(m, 8)
        mp = tm
    else:
        tm = tm_pref
        mp = _round_up(m, tm)

    np_full = _round_up(n, 128)

    # ---- weight residency: full-K x full-N weight block if it fits VMEM ----
    resident_bytes = 2 * k * np_full * esz            # double-buffer counted
    if resident_bytes <= _weight_budget_bytes():
        tn, np_ = np_full, np_full
        tk = k
    else:
        tn = min(max((tn_pref // 128) * 128, 128), np_full)
        np_ = _round_up(n, tn)
        tk = k if fuse_ln else _choose_tk(k, tk_pref)  # LN needs full-K rows
    nk = k // tk
    nj = np_ // tn

    # ---- pad operands --------------------------------------------------------
    xp = x.astype(DTYPE)
    if mp != m:
        xp = jnp.pad(xp, ((0, mp - m), (0, 0)))
    wp = w.astype(DTYPE)
    bp = b.reshape(1, n).astype(jnp.float32)
    if np_ != n:
        wp = jnp.pad(wp, ((0, 0), (0, np_ - n)))
        bp = jnp.pad(bp, ((0, 0), (0, np_ - n)))

    inputs = [xp, wp, bp]
    in_specs = [
        pl.BlockSpec((tm, tk), lambda i, j, kk: (i, kk)),
        pl.BlockSpec((tk, tn), lambda i, j, kk: (kk, j)),
        pl.BlockSpec((1, tn), lambda i, j, kk: (0, j)),
    ]
    if fuse_ln:
        g, beta = ln
        inputs += [g.reshape(1, k).astype(jnp.float32),
                   beta.reshape(1, k).astype(jnp.float32)]
        in_specs += [pl.BlockSpec((1, tk), lambda i, j, kk: (0, kk)),
                     pl.BlockSpec((1, tk), lambda i, j, kk: (0, kk))]
    if has_res:
        r = residual.astype(DTYPE)
        if (mp, np_) != (m, n):
            r = jnp.pad(r, ((0, mp - m), (0, np_ - n)))
        inputs.append(r)
        in_specs.append(pl.BlockSpec((tm, tn), lambda i, j, kk: (i, j)))

    # ---- scratch & VMEM footprint -------------------------------------------
    scratch = []
    if nk > 1:
        scratch.append(pltpu.VMEM((tm, tn), jnp.float32))
    ln_cache = fuse_ln and nj > 1
    if ln_cache:
        scratch.append(pltpu.VMEM((tm, k), DTYPE))

    fp = 2 * (tm * tk * esz)                       # x blocks (double buffered)
    fp += 2 * (tk * tn * esz)                      # weight blocks
    fp += 2 * (tn * 4)                             # bias
    if fuse_ln:
        fp += 2 * (2 * tk * 4)                     # gamma / beta
    if has_res:
        fp += 2 * (tm * tn * esz)                  # residual blocks
    fp += 2 * (tm * tn * jnp.dtype(out_dtype).itemsize)   # output blocks
    if nk > 1:
        fp += tm * tn * 4
    if ln_cache:
        fp += tm * k * esz

    kern = functools.partial(_fused_linear_kernel, nk=nk, nj=nj,
                             activation=activation, fuse_ln=fuse_ln,
                             has_res=has_res)
    out = pl.pallas_call(
        kern,
        grid=(mp // tm, nj, nk),
        in_specs=in_specs,
        out_specs=pl.BlockSpec((tm, tn), lambda i, j, kk: (i, j)),
        out_shape=jax.ShapeDtypeStruct((mp, np_), out_dtype),
        scratch_shapes=scratch,
        compiler_params=pltpu.CompilerParams(
            dimension_semantics=("parallel", "arbitrary", "arbitrary"),
            vmem_limit_bytes=_vmem_limit(fp),
        ),
    )(*inputs)
    if (mp, np_) != (m, n):
        out = out[:m, :n]
    return out


# ----------------------------------------------------------------------------
# multi-head attention: one batch element per grid step, all heads in-kernel.
# q/k/v come from *ref* slices (only [N, dh] loaded per matmul); each head-pair
# output is stored into o_ref as produced (bounded live ranges, no big concat).
# The softmax scale is already folded into the Q columns of qkv_w.
# ----------------------------------------------------------------------------
def _mha_kernel(qkv_ref, o_ref, *, nh, dh, exp_dtype):
    d = nh * dh
    group = 2 if nh % 2 == 0 else 1        # pair heads -> wider (lane-denser) stores
    for h0 in range(0, nh, group):
        outs = []
        for h in range(h0, h0 + group):
            q = qkv_ref[:, h * dh:(h + 1) * dh]                     # [N, dh]
            k = qkv_ref[:, d + h * dh:d + (h + 1) * dh]             # [N, dh]
            v = qkv_ref[:, 2 * d + h * dh:2 * d + (h + 1) * dh]     # [N, dh]
            s = jax.lax.dot_general(q, k, (((1,), (1,)), ((), ())),
                                    preferred_element_type=jnp.float32)  # q @ k.T
            s = s - jnp.max(s, axis=-1, keepdims=True)
            p = jnp.exp(s.astype(exp_dtype))                        # bf16 EUP on v6e/v7x
            denom = jnp.sum(p.astype(jnp.float32), axis=-1, keepdims=True)
            out_h = jax.lax.dot_general(p.astype(v.dtype), v,
                                        (((1,), (0,)), ((), ())),
                                        preferred_element_type=jnp.float32)
            out_h = out_h * pl.reciprocal(denom, approx=True)       # scale [N, dh], not [N, N]
            outs.append(out_h)
        blk = outs[0] if group == 1 else jnp.concatenate(outs, axis=-1)
        o_ref[:, h0 * dh:(h0 + group) * dh] = blk.astype(o_ref.dtype)


def mha(qkv3, num_heads, dh):
    bsz, n, three_d = qkv3.shape
    d = num_heads * dh
    kern = functools.partial(_mha_kernel, nh=num_heads, dh=dh,
                             exp_dtype=_softmax_exp_dtype())
    # footprint: qkv slab + output (double buffered) + a couple of [N,N] f32 score tiles
    fp = 2 * (n * three_d * 2) + 2 * (n * d * 2) + 4 * (n * n * 4)
    return pl.pallas_call(
        kern,
        grid=(bsz,),
        in_specs=[pl.BlockSpec((pl.Squeezed(), n, three_d), lambda b: (b, 0, 0))],
        out_specs=pl.BlockSpec((pl.Squeezed(), n, d), lambda b: (b, 0, 0)),
        out_shape=jax.ShapeDtypeStruct((bsz, n, d), DTYPE),
        compiler_params=pltpu.CompilerParams(
            dimension_semantics=("parallel",),
            vmem_limit_bytes=_vmem_limit(fp),
        ),
    )(qkv3)


# ----------------------------------------------------------------------------
# fused final-LN + head matmul + L2N (cls token only), class-dim tiled
# ----------------------------------------------------------------------------
def _head_kernel(x_ref, g_ref, bb_ref, w_ref, hb_ref, feat_ref, logit_ref, f_ref):
    @pl.when(pl.program_id(0) == 0)
    def _():
        x = x_ref[...].astype(jnp.float32)
        mu = jnp.mean(x, axis=-1, keepdims=True)
        var = jnp.mean(jnp.square(x - mu), axis=-1, keepdims=True)
        f = (x - mu) * jax.lax.rsqrt(var + EPS_LN) * g_ref[...] + bb_ref[...]
        f_ref[...] = f
        nrm = jnp.sqrt(jnp.sum(f * f, axis=-1, keepdims=True))
        feat_ref[...] = f / (nrm + EPS_L2)            # L2N: x / (||x||_2 + eps)
    logit_ref[...] = (jnp.dot(f_ref[...].astype(w_ref.dtype), w_ref[...],
                              preferred_element_type=jnp.float32) + hb_ref[...])


def head_l2n(cls_tok, g, beta, w, b, *, tnc_pref=1024):
    bsz, d = cls_tok.shape
    nc = w.shape[1]
    bp = _round_up(bsz, 8)                            # sublane-dense output rows
    ncp = _round_up(max(nc, 128), 128)
    tnc = min(max((tnc_pref // 128) * 128, 128), ncp)  # class-dim tile (v7x VMEM guard)
    ncp = _round_up(ncp, tnc)

    xin = cls_tok.astype(DTYPE)
    if bp != bsz:
        xin = jnp.pad(xin, ((0, bp - bsz), (0, 0)))
    wp = jnp.pad(w.astype(DTYPE), ((0, 0), (0, ncp - nc)))
    hb = jnp.pad(b.reshape(1, nc).astype(jnp.float32), ((0, 0), (0, ncp - nc)))

    fp = 2 * (bp * d * 2 + 2 * d * 4) + 2 * (d * tnc * 2 + tnc * 4) \
        + 2 * (bp * d * 4 + bp * tnc * 4) + bp * d * 4

    feat, logits = pl.pallas_call(
        _head_kernel,
        grid=(ncp // tnc,),
        in_specs=[
            pl.BlockSpec((bp, d), lambda j: (0, 0)),
            pl.BlockSpec((1, d), lambda j: (0, 0)),
            pl.BlockSpec((1, d), lambda j: (0, 0)),
            pl.BlockSpec((d, tnc), lambda j: (0, j)),
            pl.BlockSpec((1, tnc), lambda j: (0, j)),
        ],
        out_specs=(pl.BlockSpec((bp, d), lambda j: (0, 0)),
                   pl.BlockSpec((bp, tnc), lambda j: (0, j))),
        out_shape=(jax.ShapeDtypeStruct((bp, d), jnp.float32),
                   jax.ShapeDtypeStruct((bp, ncp), jnp.float32)),
        scratch_shapes=[pltpu.VMEM((bp, d), jnp.float32)],
        compiler_params=pltpu.CompilerParams(
            dimension_semantics=("arbitrary",),
            vmem_limit_bytes=_vmem_limit(fp),
        ),
    )(xin, g.reshape(1, d).astype(jnp.float32),
      beta.reshape(1, d).astype(jnp.float32), wp, hb)
    return feat[:bsz], logits[:bsz, :nc]


# ----------------------------------------------------------------------------
# Synthetic ViT backbone parameters (deterministic init, bf16 weights).
# The attention scale (head_dim**-0.5) is folded into the Q columns of qkv_w/b
# at init time (when loading torch weights, do the same fold at conversion).
# ----------------------------------------------------------------------------
def init_params(key, *, in_chans, patch, embed_dim, depth, mlp_hidden,
                num_classes, num_tokens, num_heads):
    std = 0.02
    keys = jax.random.split(key, depth + 5)
    patch_dim = in_chans * patch * patch
    dh = embed_dim // num_heads
    scale = dh ** -0.5
    params = {
        "patch_w": (jax.random.normal(keys[0], (patch_dim, embed_dim), jnp.float32) * std).astype(DTYPE),
        "patch_b": jnp.zeros((embed_dim,), jnp.float32),
        "cls_token": (jax.random.normal(keys[1], (1, 1, embed_dim), jnp.float32) * std).astype(DTYPE),
        "pos_embed": (jax.random.normal(keys[2], (1, num_tokens, embed_dim), jnp.float32) * std).astype(DTYPE),
        "ln_f_g": jnp.ones((embed_dim,), jnp.float32),
        "ln_f_b": jnp.zeros((embed_dim,), jnp.float32),
        "head_w": (jax.random.normal(keys[3], (embed_dim, num_classes), jnp.float32) * std).astype(DTYPE),
        "head_b": jnp.zeros((num_classes,), jnp.float32),
        "blocks": [],
    }
    for i in range(depth):
        bk = jax.random.split(keys[4 + i], 4)
        qkv_w = jax.random.normal(bk[0], (embed_dim, 3 * embed_dim), jnp.float32) * std
        qkv_w = qkv_w.at[:, :embed_dim].multiply(scale)       # fold softmax scale into Q
        qkv_b = jnp.zeros((3 * embed_dim,), jnp.float32)
        qkv_b = qkv_b.at[:embed_dim].multiply(scale)
        params["blocks"].append({
            "ln1_g": jnp.ones((embed_dim,), jnp.float32),
            "ln1_b": jnp.zeros((embed_dim,), jnp.float32),
            "qkv_w": qkv_w.astype(DTYPE),
            "qkv_b": qkv_b,
            "proj_w": (jax.random.normal(bk[1], (embed_dim, embed_dim), jnp.float32) * std).astype(DTYPE),
            "proj_b": jnp.zeros((embed_dim,), jnp.float32),
            "ln2_g": jnp.ones((embed_dim,), jnp.float32),
            "ln2_b": jnp.zeros((embed_dim,), jnp.float32),
            "fc1_w": (jax.random.normal(bk[2], (embed_dim, mlp_hidden), jnp.float32) * std).astype(DTYPE),
            "fc1_b": jnp.zeros((mlp_hidden,), jnp.float32),
            "fc2_w": (jax.random.normal(bk[3], (mlp_hidden, embed_dim), jnp.float32) * std).astype(DTYPE),
            "fc2_b": jnp.zeros((embed_dim,), jnp.float32),
        })
    return params


# ----------------------------------------------------------------------------
# VITImageRetrievalNet.forward:
#   o = net.forward_features(x); x = net.head(o); o = L2N(o).squeeze(-1).squeeze(-1)
#   return (o, x)
# ----------------------------------------------------------------------------
def vit_image_retrieval_forward(params, x, *, patch, num_heads):
    B, C, H, W = x.shape
    nH, nW = H // patch, W // patch
    n_patches = nH * nW
    D = params["patch_w"].shape[1]

    # --- patch embedding (conv stride=patch == patchify + matmul) ------------
    xp = x.reshape(B, C, nH, patch, nW, patch)
    xp = jnp.transpose(xp, (0, 2, 4, 1, 3, 5)).reshape(B * n_patches, C * patch * patch)
    tok = fused_linear(xp, params["patch_w"], params["patch_b"]).reshape(B, n_patches, D)

    # --- cls token + positional embedding ------------------------------------
    cls = jnp.broadcast_to(params["cls_token"], (B, 1, D)).astype(DTYPE)
    h = jnp.concatenate([cls, tok], axis=1) + params["pos_embed"]   # [B, N, D] bf16
    N = n_patches + 1
    dh = D // num_heads
    h = h.reshape(B * N, D)

    # --- transformer blocks (5 fused pallas_calls per block) -----------------
    for blk in params["blocks"]:
        qkv = fused_linear(h, blk["qkv_w"], blk["qkv_b"],
                           ln=(blk["ln1_g"], blk["ln1_b"]))          # LN1 + QKV
        a = mha(qkv.reshape(B, N, 3 * D), num_heads, dh)             # [B, N, D]
        h = fused_linear(a.reshape(B * N, D), blk["proj_w"], blk["proj_b"],
                         residual=h)                                  # proj + residual
        m = fused_linear(h, blk["fc1_w"], blk["fc1_b"],
                         ln=(blk["ln2_g"], blk["ln2_b"]),
                         activation="gelu")                           # LN2 + FC1 + GELU
        h = fused_linear(m, blk["fc2_w"], blk["fc2_b"], residual=h)   # FC2 + residual

    # --- final LN (cls row) + head matmul + L2N, fused ------------------------
    cls_tok = h.reshape(B, N, D)[:, 0]                                # [B, D]
    o_norm, logits = head_l2n(cls_tok, params["ln_f_g"], params["ln_f_b"],
                              params["head_w"], params["head_b"])
    # L2N(o).squeeze(-1).squeeze(-1) is a no-op squeeze on [B, D]
    return o_norm, logits


if __name__ == "__main__":
    # small ViT config: 16x16 image, patch 8 -> 4 patches (+1 cls = 5 tokens)
    B, C, HW = 2, 3, 16
    PATCH, EMBED, DEPTH, HEADS = 8, 32, 2, 4
    MLP_HIDDEN, NUM_CLASSES = 64, 10
    NUM_TOKENS = (HW // PATCH) ** 2 + 1

    key = jax.random.PRNGKey(0)
    pkey, xkey = jax.random.split(key)
    params = init_params(pkey, in_chans=C, patch=PATCH, embed_dim=EMBED,
                         depth=DEPTH, mlp_hidden=MLP_HIDDEN,
                         num_classes=NUM_CLASSES, num_tokens=NUM_TOKENS,
                         num_heads=HEADS)
    x = jax.random.normal(xkey, (B, C, HW, HW), jnp.float32)

    fwd = jax.jit(functools.partial(vit_image_retrieval_forward,
                                    patch=PATCH, num_heads=HEADS))
    o, logits = fwd(params, x)
    jax.block_until_ready(o)
    jax.block_until_ready(logits)

    assert o.shape == (B, EMBED) and logits.shape == (B, NUM_CLASSES)
    # L2N sanity: rows of o should have ~unit norm
    assert bool(jnp.all(jnp.abs(jnp.linalg.norm(o, axis=1) - 1.0) < 1e-3))
    print("KERNEL_OK")
</pallas_src>

<mosaic_0001>
module attributes {stable_mosaic.version = 11 : i64} {
  func.func @_fused_linear_kernel(%arg0: i32, %arg1: i32, %arg2: i32, %arg3: memref<8x192xbf16, #tpu.memory_space<vmem>>, %arg4: memref<192x128xbf16, #tpu.memory_space<vmem>>, %arg5: memref<1x128xf32, #tpu.memory_space<vmem>>, %arg6: memref<8x128xbf16, #tpu.memory_space<vmem>>) attributes {dimension_semantics = [#tpu.dimension_semantics<parallel>, #tpu.dimension_semantics<arbitrary>, #tpu.dimension_semantics<arbitrary>], iteration_bounds = array<i64: 1, 1, 1>, scalar_prefetch = 0 : i64, scratch_operands = 0 : i64, tpu.core_type = #tpu.core_type<tc>, window_params = [{transform_indices = @transform_0, window_bounds = array<i64: 8, 192>}, {transform_indices = @transform_1, window_bounds = array<i64: 192, 128>}, {transform_indices = @transform_2, window_bounds = array<i64: 1, 128>}, {transform_indices = @transform_3, window_bounds = array<i64: 8, 128>}]} {
    %c0 = arith.constant 0 : index
    %c0_0 = arith.constant 0 : index
    %0 = vector.load %arg3[%c0, %c0_0] : memref<8x192xbf16, #tpu.memory_space<vmem>>, vector<8x192xbf16>
    %c0_1 = arith.constant 0 : index
    %c0_2 = arith.constant 0 : index
    %1 = vector.load %arg4[%c0_1, %c0_2] : memref<192x128xbf16, #tpu.memory_space<vmem>>, vector<192x128xbf16>
    %cst = arith.constant dense<0.000000e+00> : vector<8x128xf32>
    %2 = tpu.matmul %0, %1, %cst {dimension_numbers = #tpu.dot_dimension_numbers<[1], [0], [0], [1], [0, 0, 1, 1], [], []>} : vector<8x192xbf16>, vector<192x128xbf16>, vector<8x128xf32> -> vector<8x128xf32>
    %c0_3 = arith.constant 0 : index
    %c0_4 = arith.constant 0 : index
    %3 = vector.load %arg5[%c0_3, %c0_4] : memref<1x128xf32, #tpu.memory_space<vmem>>, vector<1x128xf32>
    %4 = vector.broadcast %3 : vector<1x128xf32> to vector<8x128xf32>
    %5 = arith.addf %2, %4 : vector<8x128xf32>
    %6 = arith.truncf %5 : vector<8x128xf32> to vector<8x128xbf16>
    %c0_5 = arith.constant 0 : index
    %c0_6 = arith.constant 0 : index
    %7 = vector.load %arg6[%c0_5, %c0_6] : memref<8x128xbf16, #tpu.memory_space<vmem>>, vector<8x128xbf16>
    tpu.vector_store %arg6[%c0_5, %c0_6], %6 {strides = array<i32>} : memref<8x128xbf16, #tpu.memory_space<vmem>>, vector<8x128xbf16>,
    return
  }
  func.func @transform_0(%arg0: i32, %arg1: i32, %arg2: i32) -> (i32, i32) {
    %c0_i32 = arith.constant 0 : i32
    return %arg0, %arg2 : i32, i32
  }
  func.func @transform_1(%arg0: i32, %arg1: i32, %arg2: i32) -> (i32, i32) {
    %c0_i32 = arith.constant 0 : i32
    return %arg2, %arg1 : i32, i32
  }
  func.func @transform_2(%arg0: i32, %arg1: i32, %arg2: i32) -> (i32, i32) {
    %c0_i32 = arith.constant 0 : i32
    %c0_i32_0 = arith.constant 0 : i32
    return %c0_i32, %arg1 : i32, i32
  }
  func.func @transform_3(%arg0: i32, %arg1: i32, %arg2: i32) -> (i32, i32) {
    %c0_i32 = arith.constant 0 : i32
    return %arg0, %arg1 : i32, i32
  }
}

module attributes {stable_mosaic.version = 11 : i64} {
  func.func @_fused_linear_kernel(%arg0: i32, %arg1: i32, %arg2: i32, %arg3: memref<16x32xbf16, #tpu.memory_space<vmem>>, %arg4: memref<32x128xbf16, #tpu.memory_space<vmem>>, %arg5: memref<1x128xf32, #tpu.memory_space<vmem>>, %arg6: memref<1x32xf32, #tpu.memory_space<vmem>>, %arg7: memref<1x32xf32, #tpu.memory_space<vmem>>, %arg8: memref<16x128xbf16, #tpu.memory_space<vmem>>) attributes {dimension_semantics = [#tpu.dimension_semantics<parallel>, #tpu.dimension_semantics<arbitrary>, #tpu.dimension_semantics<arbitrary>], iteration_bounds = array<i64: 1, 1, 1>, scalar_prefetch = 0 : i64, scratch_operands = 0 : i64, tpu.core_type = #tpu.core_type<tc>, window_params = [{transform_indices = @transform_0, window_bounds = array<i64: 16, 32>}, {transform_indices = @transform_1, window_bounds = array<i64: 32, 128>}, {transform_indices = @transform_2, window_bounds = array<i64: 1, 128>}, {transform_indices = @transform_3, window_bounds = array<i64: 1, 32>}, {transform_indices = @transform_4, window_bounds = array<i64: 1, 32>}, {transform_indices = @transform_5, window_bounds = array<i64: 16, 128>}]} {
    %c0 = arith.constant 0 : index
    %c0_0 = arith.constant 0 : index
    %0 = vector.load %arg3[%c0, %c0_0] : memref<16x32xbf16, #tpu.memory_space<vmem>>, vector<16x32xbf16>
    %1 = arith.extf %0 : vector<16x32xbf16> to vector<16x32xf32>
    %cst = arith.constant dense<0.000000e+00> : vector<16xf32>
    %2 = vector.multi_reduction <add>, %1, %cst [1] : vector<16x32xf32> to vector<16xf32>
    %3 = vector.shape_cast %2 : vector<16xf32> to vector<16x1xf32>
    %cst_1 = arith.constant 3.200000e+01 : f32
    %4 = vector.broadcast %cst_1 : f32 to vector<16x1xf32>
    %5 = arith.divf %3, %4 : vector<16x1xf32>
    %6 = vector.broadcast %5 : vector<16x1xf32> to vector<16x32xf32>
    %7 = arith.subf %1, %6 : vector<16x32xf32>
    %8 = arith.mulf %7, %7 : vector<16x32xf32>
    %cst_2 = arith.constant dense<0.000000e+00> : vector<16xf32>
    %9 = vector.multi_reduction <add>, %8, %cst_2 [1] : vector<16x32xf32> to vector<16xf32>
    %10 = vector.shape_cast %9 : vector<16xf32> to vector<16x1xf32>
    %cst_3 = arith.constant 3.200000e+01 : f32
    %11 = vector.broadcast %cst_3 : f32 to vector<16x1xf32>
    %12 = arith.divf %10, %11 : vector<16x1xf32>
    %13 = vector.broadcast %5 : vector<16x1xf32> to vector<16x32xf32>
    %14 = arith.subf %1, %13 : vector<16x32xf32>
    %cst_4 = arith.constant 9.99999997E-7 : f32
    %15 = vector.broadcast %cst_4 : f32 to vector<16x1xf32>
    %16 = arith.addf %12, %15 : vector<16x1xf32>
    %17 = math.rsqrt %16 : vector<16x1xf32>
    %18 = vector.broadcast %17 : vector<16x1xf32> to vector<16x32xf32>
    %19 = arith.mulf %14, %18 : vector<16x32xf32>
    %c0_5 = arith.constant 0 : index
    %c0_6 = arith.constant 0 : index
    %20 = vector.load %arg6[%c0_5, %c0_6] : memref<1x32xf32, #tpu.memory_space<vmem>>, vector<1x32xf32>
    %21 = vector.broadcast %20 : vector<1x32xf32> to vector<16x32xf32>
    %22 = arith.mulf %19, %21 : vector<16x32xf32>
    %c0_7 = arith.constant 0 : index
    %c0_8 = arith.constant 0 : index
    %23 = vector.load %arg7[%c0_7, %c0_8] : memref<1x32xf32, #tpu.memory_space<vmem>>, vector<1x32xf32>
    %24 = vector.broadcast %23 : vector<1x32xf32> to vector<16x32xf32>
    %25 = arith.addf %22, %24 : vector<16x32xf32>
    %26 = arith.truncf %25 : vector<16x32xf32> to vector<16x32xbf16>
    %c0_9 = arith.constant 0 : index
    %c0_10 = arith.constant 0 : index
    %27 = vector.load %arg4[%c0_9, %c0_10] : memref<32x128xbf16, #tpu.memory_space<vmem>>, vector<32x128xbf16>
    %cst_11 = arith.constant dense<0.000000e+00> : vector<16x128xf32>
    %28 = tpu.matmul %26, %27, %cst_11 {dimension_numbers = #tpu.dot_dimension_numbers<[1], [0], [0], [1], [0, 0, 1, 1], [], []>} : vector<16x32xbf16>, vector<32x128xbf16>, vector<16x128xf32> -> vector<16x128xf32>
    %c0_12 = arith.constant 0 : index
    %c0_13 = arith.constant 0 : index
    %29 = vector.load %arg5[%c0_12, %c0_13] : memref<1x128xf32, #tpu.memory_space<vmem>>, vector<1x128xf32>
    %30 = vector.broadcast %29 : vector<1x128xf32> to vector<16x128xf32>
    %31 = arith.addf %28, %30 : vector<16x128xf32>
    %32 = arith.truncf %31 : vector<16x128xf32> to vector<16x128xbf16>
    %c0_14 = arith.constant 0 : index
    %c0_15 = arith.constant 0 : index
    %33 = vector.load %arg8[%c0_14, %c0_15] : memref<16x128xbf16, #tpu.memory_space<vmem>>, vector<16x128xbf16>
    tpu.vector_store %arg8[%c0_14, %c0_15], %32 {strides = array<i32>} : memref<16x128xbf16, #tpu.memory_space<vmem>>, vector<16x128xbf16>,
    return
  }
  func.func @transform_0(%arg0: i32, %arg1: i32, %arg2: i32) -> (i32, i32) {
    %c0_i32 = arith.constant 0 : i32
    return %arg0, %arg2 : i32, i32
  }
  func.func @transform_1(%arg0: i32, %arg1: i32, %arg2: i32) -> (i32, i32) {
    %c0_i32 = arith.constant 0 : i32
    return %arg2, %arg1 : i32, i32
  }
  func.func @transform_2(%arg0: i32, %arg1: i32, %arg2: i32) -> (i32, i32) {
    %c0_i32 = arith.constant 0 : i32
    %c0_i32_0 = arith.constant 0 : i32
    return %c0_i32, %arg1 : i32, i32
  }
  func.func @transform_3(%arg0: i32, %arg1: i32, %arg2: i32) -> (i32, i32) {
    %c0_i32 = arith.constant 0 : i32
    %c0_i32_0 = arith.constant 0 : i32
    return %c0_i32, %arg2 : i32, i32
  }
  func.func @transform_4(%arg0: i32, %arg1: i32, %arg2: i32) -> (i32, i32) {
    %c0_i32 = arith.constant 0 : i32
    %c0_i32_0 = arith.constant 0 : i32
    return %c0_i32, %arg2 : i32, i32
  }
  func.func @transform_5(%arg0: i32, %arg1: i32, %arg2: i32) -> (i32, i32) {
    %c0_i32 = arith.constant 0 : i32
    return %arg0, %arg1 : i32, i32
  }
}

module attributes {stable_mosaic.version = 11 : i64} {
  func.func @_mha_kernel(%arg0: i32, %arg1: memref<1x5x96xbf16, #tpu.memory_space<vmem>>, %arg2: memref<1x5x32xbf16, #tpu.memory_space<vmem>>) attributes {dimension_semantics = [#tpu.dimension_semantics<parallel>], iteration_bounds = array<i64: 2>, scalar_prefetch = 0 : i64, scratch_operands = 0 : i64, tpu.core_type = #tpu.core_type<tc>, window_params = [{transform_indices = @transform_0, window_bounds = array<i64: 1, 5, 96>}, {transform_indices = @transform_1, window_bounds = array<i64: 1, 5, 32>}]} {
    %c0 = arith.constant 0 : index
    %c0_0 = arith.constant 0 : index
    %c0_1 = arith.constant 0 : index
    %0 = vector.load %arg1[%c0, %c0_0, %c0_1] : memref<1x5x96xbf16, #tpu.memory_space<vmem>>, vector<1x5x8xbf16>
    %1 = vector.shape_cast %0 : vector<1x5x8xbf16> to vector<5x8xbf16>
    %c0_2 = arith.constant 0 : index
    %c0_3 = arith.constant 0 : index
    %c32 = arith.constant 32 : index
    %2 = vector.load %arg1[%c0_2, %c0_3, %c32] : memref<1x5x96xbf16, #tpu.memory_space<vmem>>, vector<1x5x8xbf16>
    %3 = vector.shape_cast %2 : vector<1x5x8xbf16> to vector<5x8xbf16>
    %c0_4 = arith.constant 0 : index
    %c0_5 = arith.constant 0 : index
    %c64 = arith.constant 64 : index
    %4 = vector.load %arg1[%c0_4, %c0_5, %c64] : memref<1x5x96xbf16, #tpu.memory_space<vmem>>, vector<1x5x8xbf16>
    %5 = vector.shape_cast %4 : vector<1x5x8xbf16> to vector<5x8xbf16>
    %cst = arith.constant dense<0.000000e+00> : vector<5x5xf32>
    %6 = tpu.matmul %1, %3, %cst {dimension_numbers = #tpu.dot_dimension_numbers<[1], [1], [0], [0], [0, 0, 1, 0], [], []>} : vector<5x8xbf16>, vector<5x8xbf16>, vector<5x5xf32> -> vector<5x5xf32>
    %cst_6 = arith.constant dense<0xFF800000> : vector<5xf32>
    %7 = vector.multi_reduction <maximumf>, %6, %cst_6 [1] : vector<5x5xf32> to vector<5xf32>
    %8 = vector.shape_cast %7 : vector<5xf32> to vector<5x1xf32>
    %9 = vector.broadcast %8 : vector<5x1xf32> to vector<5x5xf32>
    %10 = arith.subf %6, %9 : vector<5x5xf32>
    %11 = math.exp %10 : vector<5x5xf32>
    %cst_7 = arith.constant dense<0.000000e+00> : vector<5xf32>
    %12 = vector.multi_reduction <add>, %11, %cst_7 [1] : vector<5x5xf32> to vector<5xf32>
    %13 = vector.shape_cast %12 : vector<5xf32> to vector<5x1xf32>
    %14 = arith.truncf %11 : vector<5x5xf32> to vector<5x5xbf16>
    %cst_8 = arith.constant dense<0.000000e+00> : vector<5x8xf32>
    %15 = tpu.matmul %14, %5, %cst_8 {dimension_numbers = #tpu.dot_dimension_numbers<[1], [0], [0], [1], [0, 0, 1, 1], [], []>} : vector<5x5xbf16>, vector<5x8xbf16>, vector<5x8xf32> -> vector<5x8xf32>
    %16 = tpu.reciprocal %13 {approx = true} : vector<5x1xf32> -> vector<5x1xf32>
    %17 = vector.broadcast %16 : vector<5x1xf32> to vector<5x8xf32>
    %18 = arith.mulf %15, %17 : vector<5x8xf32>
    %c0_9 = arith.constant 0 : index
    %c0_10 = arith.constant 0 : index
    %c8 = arith.constant 8 : index
    %19 = vector.load %arg1[%c0_9, %c0_10, %c8] : memref<1x5x96xbf16, #tpu.memory_space<vmem>>, vector<1x5x8xbf16>
    %20 = vector.shape_cast %19 : vector<1x5x8xbf16> to vector<5x8xbf16>
    %c0_11 = arith.constant 0 : index
    %c0_12 = arith.constant 0 : index
    %c40 = arith.constant 40 : index
    %21 = vector.load %arg1[%c0_11, %c0_12, %c40] : memref<1x5x96xbf16, #tpu.memory_space<vmem>>, vector<1x5x8xbf16>
    %22 = vector.shape_cast %21 : vector<1x5x8xbf16> to vector<5x8xbf16>
    %c0_13 = arith.constant 0 : index
    %c0_14 = arith.constant 0 : index
    %c72 = arith.constant 72 : index
    %23 = vector.load %arg1[%c0_13, %c0_14, %c72] : memref<1x5x96xbf16, #tpu.memory_space<vmem>>, vector<1x5x8xbf16>
    %24 = vector.shape_cast %23 : vector<1x5x8xbf16> to vector<5x8xbf16>
    %cst_15 = arith.constant dense<0.000000e+00> : vector<5x5xf32>
    %25 = tpu.matmul %20, %22, %cst_15 {dimension_numbers = #tpu.dot_dimension_numbers<[1], [1], [0], [0], [0, 0, 1, 0], [], []>} : vector<5x8xbf16>, vector<5x8xbf16>, vector<5x5xf32> -> vector<5x5xf32>
    %cst_16 = arith.constant dense<0xFF800000> : vector<5xf32>
    %26 = vector.multi_reduction <maximumf>, %25, %cst_16 [1] : vector<5x5xf32> to vector<5xf32>
    %27 = vector.shape_cast %26 : vector<5xf32> to vector<5x1xf32>
    %28 = vector.broadcast %27 : vector<5x1xf32> to vector<5x5xf32>
    %29 = arith.subf %25, %28 : vector<5x5xf32>
    %30 = math.exp %29 : vector<5x5xf32>
    %cst_17 = arith.constant dense<0.000000e+00> : vector<5xf32>
    %31 = vector.multi_reduction <add>, %30, %cst_17 [1] : vector<5x5xf32> to vector<5xf32>
    %32 = vector.shape_cast %31 : vector<5xf32> to vector<5x1xf32>
    %33 = arith.truncf %30 : vector<5x5xf32> to vector<5x5xbf16>
    %cst_18 = arith.constant dense<0.000000e+00> : vector<5x8xf32>
    %34 = tpu.matmul %33, %24, %cst_18 {dimension_numbers = #tpu.dot_dimension_numbers<[1], [0], [0], [1], [0, 0, 1, 1], [], []>} : vector<5x5xbf16>, vector<5x8xbf16>, vector<5x8xf32> -> vector<5x8xf32>
    %35 = tpu.reciprocal %32 {approx = true} : vector<5x1xf32> -> vector<5x1xf32>
    %36 = vector.broadcast %35 : vector<5x1xf32> to vector<5x8xf32>
    %37 = arith.mulf %34, %36 : vector<5x8xf32>
    %38 = tpu.concatenate %18, %37 in 1 : vector<5x8xf32>, vector<5x8xf32> -> vector<5x16xf32>
    %39 = arith.truncf %38 : vector<5x16xf32> to vector<5x16xbf16>
    %c0_19 = arith.constant 0 : index
    %c0_20 = arith.constant 0 : index
    %c0_21 = arith.constant 0 : index
    %40 = vector.load %arg2[%c0_19, %c0_20, %c0_21] : memref<1x5x32xbf16, #tpu.memory_space<vmem>>, vector<1x5x16xbf16>
    %41 = vector.shape_cast %40 : vector<1x5x16xbf16> to vector<5x16xbf16>
    %42 = vector.shape_cast %39 : vector<5x16xbf16> to vector<1x5x16xbf16>
    tpu.vector_store %arg2[%c0_19, %c0_20, %c0_21], %42 {strides = array<i32>} : memref<1x5x32xbf16, #tpu.memory_space<vmem>>, vector<1x5x16xbf16>,
    %c0_22 = arith.constant 0 : index
    %c0_23 = arith.constant 0 : index
    %c16 = arith.constant 16 : index
    %43 = vector.load %arg1[%c0_22, %c0_23, %c16] : memref<1x5x96xbf16, #tpu.memory_space<vmem>>, vector<1x5x8xbf16>
    %44 = vector.shape_cast %43 : vector<1x5x8xbf16> to vector<5x8xbf16>
    %c0_24 = arith.constant 0 : index
    %c0_25 = arith.constant 0 : index
    %c48 = arith.constant 48 : index
    %45 = vector.load %arg1[%c0_24, %c0_25, %c48] : memref<1x5x96xbf16, #tpu.memory_space<vmem>>, vector<1x5x8xbf16>
    %46 = vector.shape_cast %45 : vector<1x5x8xbf16> to vector<5x8xbf16>
    %c0_26 = arith.constant 0 : index
    %c0_27 = arith.constant 0 : index
    %c80 = arith.constant 80 : index
    %47 = vector.load %arg1[%c0_26, %c0_27, %c80] : memref<1x5x96xbf16, #tpu.memory_space<vmem>>, vector<1x5x8xbf16>
    %48 = vector.shape_cast %47 : vector<1x5x8xbf16> to vector<5x8xbf16>
    %cst_28 = arith.constant dense<0.000000e+00> : vector<5x5xf32>
    %49 = tpu.matmul %44, %46, %cst_28 {dimension_numbers = #tpu.dot_dimension_numbers<[1], [1], [0], [0], [0, 0, 1, 0], [], []>} : vector<5x8xbf16>, vector<5x8xbf16>, vector<5x5xf32> -> vector<5x5xf32>
    %cst_29 = arith.constant dense<0xFF800000> : vector<5xf32>
    %50 = vector.multi_reduction <maximumf>, %49, %cst_29 [1] : vector<5x5xf32> to vector<5xf32>
    %51 = vector.shape_cast %50 : vector<5xf32> to vector<5x1xf32>
    %52 = vector.broadcast %51 : vector<5x1xf32> to vector<5x5xf32>
    %53 = arith.subf %49, %52 : vector<5x5xf32>
    %54 = math.exp %53 : vector<5x5xf32>
    %cst_30 = arith.constant dense<0.000000e+00> : vector<5xf32>
    %55 = vector.multi_reduction <add>, %54, %cst_30 [1] : vector<5x5xf32> to vector<5xf32>
    %56 = vector.shape_cast %55 : vector<5xf32> to vector<5x1xf32>
    %57 = arith.truncf %54 : vector<5x5xf32> to vector<5x5xbf16>
    %cst_31 = arith.constant dense<0.000000e+00> : vector<5x8xf32>
    %58 = tpu.matmul %57, %48, %cst_31 {dimension_numbers = #tpu.dot_dimension_numbers<[1], [0], [0], [1], [0, 0, 1, 1], [], []>} : vector<5x5xbf16>, vector<5x8xbf16>, vector<5x8xf32> -> vector<5x8xf32>
    %59 = tpu.reciprocal %56 {approx = true} : vector<5x1xf32> -> vector<5x1xf32>
    %60 = vector.broadcast %59 : vector<5x1xf32> to vector<5x8xf32>
    %61 = arith.mulf %58, %60 : vector<5x8xf32>
    %c0_32 = arith.constant 0 : index
    %c0_33 = arith.constant 0 : index
    %c24 = arith.constant 24 : index
    %62 = vector.load %arg1[%c0_32, %c0_33, %c24] : memref<1x5x96xbf16, #tpu.memory_space<vmem>>, vector<1x5x8xbf16>
    %63 = vector.shape_cast %62 : vector<1x5x8xbf16> to vector<5x8xbf16>
    %c0_34 = arith.constant 0 : index
    %c0_35 = arith.constant 0 : index
    %c56 = arith.constant 56 : index
    %64 = vector.load %arg1[%c0_34, %c0_35, %c56] : memref<1x5x96xbf16, #tpu.memory_space<vmem>>, vector<1x5x8xbf16>
    %65 = vector.shape_cast %64 : vector<1x5x8xbf16> to vector<5x8xbf16>
    %c0_36 = arith.constant 0 : index
    %c0_37 = arith.constant 0 : index
    %c88 = arith.constant 88 : index
    %66 = vector.load %arg1[%c0_36, %c0_37, %c88] : memref<1x5x96xbf16, #tpu.memory_space<vmem>>, vector<1x5x8xbf16>
    %67 = vector.shape_cast %66 : vector<1x5x8xbf16> to vector<5x8xbf16>
    %cst_38 = arith.constant dense<0.000000e+00> : vector<5x5xf32>
    %68 = tpu.matmul %63, %65, %cst_38 {dimension_numbers = #tpu.dot_dimension_numbers<[1], [1], [0], [0], [0, 0, 1, 0], [], []>} : vector<5x8xbf16>, vector<5x8xbf16>, vector<5x5xf32> -> vector<5x5xf32>
    %cst_39 = arith.constant dense<0xFF800000> : vector<5xf32>
    %69 = vector.multi_reduction <maximumf>, %68, %cst_39 [1] : vector<5x5xf32> to vector<5xf32>
    %70 = vector.shape_cast %69 : vector<5xf32> to vector<5x1xf32>
    %71 = vector.broadcast %70 : vector<5x1xf32> to vector<5x5xf32>
    %72 = arith.subf %68, %71 : vector<5x5xf32>
    %73 = math.exp %72 : vector<5x5xf32>
    %cst_40 = arith.constant dense<0.000000e+00> : vector<5xf32>
    %74 = vector.multi_reduction <add>, %73, %cst_40 [1] : vector<5x5xf32> to vector<5xf32>
    %75 = vector.shape_cast %74 : vector<5xf32> to vector<5x1xf32>
    %76 = arith.truncf %73 : vector<5x5xf32> to vector<5x5xbf16>
    %cst_41 = arith.constant dense<0.000000e+00> : vector<5x8xf32>
    %77 = tpu.matmul %76, %67, %cst_41 {dimension_numbers = #tpu.dot_dimension_numbers<[1], [0], [0], [1], [0, 0, 1, 1], [], []>} : vector<5x5xbf16>, vector<5x8xbf16>, vector<5x8xf32> -> vector<5x8xf32>
    %78 = tpu.reciprocal %75 {approx = true} : vector<5x1xf32> -> vector<5x1xf32>
    %79 = vector.broadcast %78 : vector<5x1xf32> to vector<5x8xf32>
    %80 = arith.mulf %77, %79 : vector<5x8xf32>
    %81 = tpu.concatenate %61, %80 in 1 : vector<5x8xf32>, vector<5x8xf32> -> vector<5x16xf32>
    %82 = arith.truncf %81 : vector<5x16xf32> to vector<5x16xbf16>
    %c0_42 = arith.constant 0 : index
    %c0_43 = arith.constant 0 : index
    %c16_44 = arith.constant 16 : index
    %83 = vector.load %arg2[%c0_42, %c0_43, %c16_44] : memref<1x5x32xbf16, #tpu.memory_space<vmem>>, vector<1x5x16xbf16>
    %84 = vector.shape_cast %83 : vector<1x5x16xbf16> to vector<5x16xbf16>
    %85 = vector.shape_cast %82 : vector<5x16xbf16> to vector<1x5x16xbf16>
    tpu.vector_store %arg2[%c0_42, %c0_43, %c16_44], %85 {strides = array<i32>} : memref<1x5x32xbf16, #tpu.memory_space<vmem>>, vector<1x5x16xbf16>,
    return
  }
  func.func @transform_0(%arg0: i32) -> (i32, i32, i32) {
    %c0_i32 = arith.constant 0 : i32
    %c0_i32_0 = arith.constant 0 : i32
    %c0_i32_1 = arith.constant 0 : i32
    return %arg0, %c0_i32, %c0_i32_0 : i32, i32, i32
  }
  func.func @transform_1(%arg0: i32) -> (i32, i32, i32) {
    %c0_i32 = arith.constant 0 : i32
    %c0_i32_0 = arith.constant 0 : i32
    %c0_i32_1 = arith.constant 0 : i32
    return %arg0, %c0_i32, %c0_i32_0 : i32, i32, i32
  }
}

module attributes {stable_mosaic.version = 11 : i64} {
  func.func @_fused_linear_kernel(%arg0: i32, %arg1: i32, %arg2: i32, %arg3: memref<16x32xbf16, #tpu.memory_space<vmem>>, %arg4: memref<32x128xbf16, #tpu.memory_space<vmem>>, %arg5: memref<1x128xf32, #tpu.memory_space<vmem>>, %arg6: memref<16x128xbf16, #tpu.memory_space<vmem>>, %arg7: memref<16x128xbf16, #tpu.memory_space<vmem>>) attributes {dimension_semantics = [#tpu.dimension_semantics<parallel>, #tpu.dimension_semantics<arbitrary>, #tpu.dimension_semantics<arbitrary>], iteration_bounds = array<i64: 1, 1, 1>, scalar_prefetch = 0 : i64, scratch_operands = 0 : i64, tpu.core_type = #tpu.core_type<tc>, window_params = [{transform_indices = @transform_0, window_bounds = array<i64: 16, 32>}, {transform_indices = @transform_1, window_bounds = array<i64: 32, 128>}, {transform_indices = @transform_2, window_bounds = array<i64: 1, 128>}, {transform_indices = @transform_3, window_bounds = array<i64: 16, 128>}, {transform_indices = @transform_4, window_bounds = array<i64: 16, 128>}]} {
    %c0 = arith.constant 0 : index
    %c0_0 = arith.constant 0 : index
    %0 = vector.load %arg3[%c0, %c0_0] : memref<16x32xbf16, #tpu.memory_space<vmem>>, vector<16x32xbf16>
    %c0_1 = arith.constant 0 : index
    %c0_2 = arith.constant 0 : index
    %1 = vector.load %arg4[%c0_1, %c0_2] : memref<32x128xbf16, #tpu.memory_space<vmem>>, vector<32x128xbf16>
    %cst = arith.constant dense<0.000000e+00> : vector<16x128xf32>
    %2 = tpu.matmul %0, %1, %cst {dimension_numbers = #tpu.dot_dimension_numbers<[1], [0], [0], [1], [0, 0, 1, 1], [], []>} : vector<16x32xbf16>, vector<32x128xbf16>, vector<16x128xf32> -> vector<16x128xf32>
    %c0_3 = arith.constant 0 : index
    %c0_4 = arith.constant 0 : index
    %3 = vector.load %arg5[%c0_3, %c0_4] : memref<1x128xf32, #tpu.memory_space<vmem>>, vector<1x128xf32>
    %4 = vector.broadcast %3 : vector<1x128xf32> to vector<16x128xf32>
    %5 = arith.addf %2, %4 : vector<16x128xf32>
    %c0_5 = arith.constant 0 : index
    %c0_6 = arith.constant 0 : index
    %6 = vector.load %arg6[%c0_5, %c0_6] : memref<16x128xbf16, #tpu.memory_space<vmem>>, vector<16x128xbf16>
    %7 = arith.extf %6 : vector<16x128xbf16> to vector<16x128xf32>
    %8 = arith.addf %5, %7 : vector<16x128xf32>
    %9 = arith.truncf %8 : vector<16x128xf32> to vector<16x128xbf16>
    %c0_7 = arith.constant 0 : index
    %c0_8 = arith.constant 0 : index
    %10 = vector.load %arg7[%c0_7, %c0_8] : memref<16x128xbf16, #tpu.memory_space<vmem>>, vector<16x128xbf16>
    tpu.vector_store %arg7[%c0_7, %c0_8], %9 {strides = array<i32>} : memref<16x128xbf16, #tpu.memory_space<vmem>>, vector<16x128xbf16>,
    return
  }
  func.func @transform_0(%arg0: i32, %arg1: i32, %arg2: i32) -> (i32, i32) {
    %c0_i32 = arith.constant 0 : i32
    return %arg0, %arg2 : i32, i32
  }
  func.func @transform_1(%arg0: i32, %arg1: i32, %arg2: i32) -> (i32, i32) {
    %c0_i32 = arith.constant 0 : i32
    return %arg2, %arg1 : i32, i32
  }
  func.func @transform_2(%arg0: i32, %arg1: i32, %arg2: i32) -> (i32, i32) {
    %c0_i32 = arith.constant 0 : i32
    %c0_i32_0 = arith.constant 0 : i32
    return %c0_i32, %arg1 : i32, i32
  }
  func.func @transform_3(%arg0: i32, %arg1: i32, %arg2: i32) -> (i32, i32) {
    %c0_i32 = arith.constant 0 : i32
    return %arg0, %arg1 : i32, i32
  }
  func.func @transform_4(%arg0: i32, %arg1: i32, %arg2: i32) -> (i32, i32) {
    %c0_i32 = arith.constant 0 : i32
    return %arg0, %arg1 : i32, i32
  }
}

module attributes {stable_mosaic.version = 11 : i64} {
  func.func @_fused_linear_kernel(%arg0: i32, %arg1: i32, %arg2: i32, %arg3: memref<16x64xbf16, #tpu.memory_space<vmem>>, %arg4: memref<64x128xbf16, #tpu.memory_space<vmem>>, %arg5: memref<1x128xf32, #tpu.memory_space<vmem>>, %arg6: memref<16x128xbf16, #tpu.memory_space<vmem>>, %arg7: memref<16x128xbf16, #tpu.memory_space<vmem>>) attributes {dimension_semantics = [#tpu.dimension_semantics<parallel>, #tpu.dimension_semantics<arbitrary>, #tpu.dimension_semantics<arbitrary>], iteration_bounds = array<i64: 1, 1, 1>, scalar_prefetch = 0 : i64, scratch_operands = 0 : i64, tpu.core_type = #tpu.core_type<tc>, window_params = [{transform_indices = @transform_0, window_bounds = array<i64: 16, 64>}, {transform_indices = @transform_1, window_bounds = array<i64: 64, 128>}, {transform_indices = @transform_2, window_bounds = array<i64: 1, 128>}, {transform_indices = @transform_3, window_bounds = array<i64: 16, 128>}, {transform_indices = @transform_4, window_bounds = array<i64: 16, 128>}]} {
    %c0 = arith.constant 0 : index
    %c0_0 = arith.constant 0 : index
    %0 = vector.load %arg3[%c0, %c0_0] : memref<16x64xbf16, #tpu.memory_space<vmem>>, vector<16x64xbf16>
    %c0_1 = arith.constant 0 : index
    %c0_2 = arith.constant 0 : index
    %1 = vector.load %arg4[%c0_1, %c0_2] : memref<64x128xbf16, #tpu.memory_space<vmem>>, vector<64x128xbf16>
    %cst = arith.constant dense<0.000000e+00> : vector<16x128xf32>
    %2 = tpu.matmul %0, %1, %cst {dimension_numbers = #tpu.dot_dimension_numbers<[1], [0], [0], [1], [0, 0, 1, 1], [], []>} : vector<16x64xbf16>, vector<64x128xbf16>, vector<16x128xf32> -> vector<16x128xf32>
    %c0_3 = arith.constant 0 : index
    %c0_4 = arith.constant 0 : index
    %3 = vector.load %arg5[%c0_3, %c0_4] : memref<1x128xf32, #tpu.memory_space<vmem>>, vector<1x128xf32>
    %4 = vector.broadcast %3 : vector<1x128xf32> to vector<16x128xf32>
    %5 = arith.addf %2, %4 : vector<16x128xf32>
    %c0_5 = arith.constant 0 : index
    %c0_6 = arith.constant 0 : index
    %6 = vector.load %arg6[%c0_5, %c0_6] : memref<16x128xbf16, #tpu.memory_space<vmem>>, vector<16x128xbf16>
    %7 = arith.extf %6 : vector<16x128xbf16> to vector<16x128xf32>
    %8 = arith.addf %5, %7 : vector<16x128xf32>
    %9 = arith.truncf %8 : vector<16x128xf32> to vector<16x128xbf16>
    %c0_7 = arith.constant 0 : index
    %c0_8 = arith.constant 0 : index
    %10 = vector.load %arg7[%c0_7, %c0_8] : memref<16x128xbf16, #tpu.memory_space<vmem>>, vector<16x128xbf16>
    tpu.vector_store %arg7[%c0_7, %c0_8], %9 {strides = array<i32>} : memref<16x128xbf16, #tpu.memory_space<vmem>>, vector<16x128xbf16>,
    return
  }
  func.func @transform_0(%arg0: i32, %arg1: i32, %arg2: i32) -> (i32, i32) {
    %c0_i32 = arith.constant 0 : i32
    return %arg0, %arg2 : i32, i32
  }
  func.func @transform_1(%arg0: i32, %arg1: i32, %arg2: i32) -> (i32, i32) {
    %c0_i32 = arith.constant 0 : i32
    return %arg2, %arg1 : i32, i32
  }
  func.func @transform_2(%arg0: i32, %arg1: i32, %arg2: i32) -> (i32, i32) {
    %c0_i32 = arith.constant 0 : i32
    %c0_i32_0 = arith.constant 0 : i32
    return %c0_i32, %arg1 : i32, i32
  }
  func.func @transform_3(%arg0: i32, %arg1: i32, %arg2: i32) -> (i32, i32) {
    %c0_i32 = arith.constant 0 : i32
    return %arg0, %arg1 : i32, i32
  }
  func.func @transform_4(%arg0: i32, %arg1: i32, %arg2: i32) -> (i32, i32) {
    %c0_i32 = arith.constant 0 : i32
    return %arg0, %arg1 : i32, i32
  }
}

module attributes {stable_mosaic.version = 11 : i64} {
  func.func @_fused_linear_kernel(%arg0: i32, %arg1: i32, %arg2: i32, %arg3: memref<16x32xbf16, #tpu.memory_space<vmem>>, %arg4: memref<32x128xbf16, #tpu.memory_space<vmem>>, %arg5: memref<1x128xf32, #tpu.memory_space<vmem>>, %arg6: memref<1x32xf32, #tpu.memory_space<vmem>>, %arg7: memref<1x32xf32, #tpu.memory_space<vmem>>, %arg8: memref<16x128xbf16, #tpu.memory_space<vmem>>) attributes {dimension_semantics = [#tpu.dimension_semantics<parallel>, #tpu.dimension_semantics<arbitrary>, #tpu.dimension_semantics<arbitrary>], iteration_bounds = array<i64: 1, 1, 1>, scalar_prefetch = 0 : i64, scratch_operands = 0 : i64, tpu.core_type = #tpu.core_type<tc>, window_params = [{transform_indices = @transform_0, window_bounds = array<i64: 16, 32>}, {transform_indices = @transform_1, window_bounds = array<i64: 32, 128>}, {transform_indices = @transform_2, window_bounds = array<i64: 1, 128>}, {transform_indices = @transform_3, window_bounds = array<i64: 1, 32>}, {transform_indices = @transform_4, window_bounds = array<i64: 1, 32>}, {transform_indices = @transform_5, window_bounds = array<i64: 16, 128>}]} {
    %c0 = arith.constant 0 : index
    %c0_0 = arith.constant 0 : index
    %0 = vector.load %arg3[%c0, %c0_0] : memref<16x32xbf16, #tpu.memory_space<vmem>>, vector<16x32xbf16>
    %1 = arith.extf %0 : vector<16x32xbf16> to vector<16x32xf32>
    %cst = arith.constant dense<0.000000e+00> : vector<16xf32>
    %2 = vector.multi_reduction <add>, %1, %cst [1] : vector<16x32xf32> to vector<16xf32>
    %3 = vector.shape_cast %2 : vector<16xf32> to vector<16x1xf32>
    %cst_1 = arith.constant 3.200000e+01 : f32
    %4 = vector.broadcast %cst_1 : f32 to vector<16x1xf32>
    %5 = arith.divf %3, %4 : vector<16x1xf32>
    %6 = vector.broadcast %5 : vector<16x1xf32> to vector<16x32xf32>
    %7 = arith.subf %1, %6 : vector<16x32xf32>
    %8 = arith.mulf %7, %7 : vector<16x32xf32>
    %cst_2 = arith.constant dense<0.000000e+00> : vector<16xf32>
    %9 = vector.multi_reduction <add>, %8, %cst_2 [1] : vector<16x32xf32> to vector<16xf32>
    %10 = vector.shape_cast %9 : vector<16xf32> to vector<16x1xf32>
    %cst_3 = arith.constant 3.200000e+01 : f32
    %11 = vector.broadcast %cst_3 : f32 to vector<16x1xf32>
    %12 = arith.divf %10, %11 : vector<16x1xf32>
    %13 = vector.broadcast %5 : vector<16x1xf32> to vector<16x32xf32>
    %14 = arith.subf %1, %13 : vector<16x32xf32>
    %cst_4 = arith.constant 9.99999997E-7 : f32
    %15 = vector.broadcast %cst_4 : f32 to vector<16x1xf32>
    %16 = arith.addf %12, %15 : vector<16x1xf32>
    %17 = math.rsqrt %16 : vector<16x1xf32>
    %18 = vector.broadcast %17 : vector<16x1xf32> to vector<16x32xf32>
    %19 = arith.mulf %14, %18 : vector<16x32xf32>
    %c0_5 = arith.constant 0 : index
    %c0_6 = arith.constant 0 : index
    %20 = vector.load %arg6[%c0_5, %c0_6] : memref<1x32xf32, #tpu.memory_space<vmem>>, vector<1x32xf32>
    %21 = vector.broadcast %20 : vector<1x32xf32> to vector<16x32xf32>
    %22 = arith.mulf %19, %21 : vector<16x32xf32>
    %c0_7 = arith.constant 0 : index
    %c0_8 = arith.constant 0 : index
    %23 = vector.load %arg7[%c0_7, %c0_8] : memref<1x32xf32, #tpu.memory_space<vmem>>, vector<1x32xf32>
    %24 = vector.broadcast %23 : vector<1x32xf32> to vector<16x32xf32>
    %25 = arith.addf %22, %24 : vector<16x32xf32>
    %26 = arith.truncf %25 : vector<16x32xf32> to vector<16x32xbf16>
    %c0_9 = arith.constant 0 : index
    %c0_10 = arith.constant 0 : index
    %27 = vector.load %arg4[%c0_9, %c0_10] : memref<32x128xbf16, #tpu.memory_space<vmem>>, vector<32x128xbf16>
    %cst_11 = arith.constant dense<0.000000e+00> : vector<16x128xf32>
    %28 = tpu.matmul %26, %27, %cst_11 {dimension_numbers = #tpu.dot_dimension_numbers<[1], [0], [0], [1], [0, 0, 1, 1], [], []>} : vector<16x32xbf16>, vector<32x128xbf16>, vector<16x128xf32> -> vector<16x128xf32>
    %c0_12 = arith.constant 0 : index
    %c0_13 = arith.constant 0 : index
    %29 = vector.load %arg5[%c0_12, %c0_13] : memref<1x128xf32, #tpu.memory_space<vmem>>, vector<1x128xf32>
    %30 = vector.broadcast %29 : vector<1x128xf32> to vector<16x128xf32>
    %31 = arith.addf %28, %30 : vector<16x128xf32>
    %32 = arith.mulf %31, %31 : vector<16x128xf32>
    %33 = arith.mulf %31, %32 : vector<16x128xf32>
    %cst_14 = arith.constant 4.471500e-02 : f32
    %34 = vector.broadcast %cst_14 : f32 to vector<16x128xf32>
    %35 = arith.mulf %34, %33 : vector<16x128xf32>
    %36 = arith.addf %31, %35 : vector<16x128xf32>
    %cst_15 = arith.constant 0.797884583 : f32
    %37 = vector.broadcast %cst_15 : f32 to vector<16x128xf32>
    %38 = arith.mulf %37, %36 : vector<16x128xf32>
    %39 = math.tanh %38 : vector<16x128xf32>
    %cst_16 = arith.constant 1.000000e+00 : f32
    %40 = vector.broadcast %cst_16 : f32 to vector<16x128xf32>
    %41 = arith.addf %40, %39 : vector<16x128xf32>
    %cst_17 = arith.constant 5.000000e-01 : f32
    %42 = vector.broadcast %cst_17 : f32 to vector<16x128xf32>
    %43 = arith.mulf %42, %41 : vector<16x128xf32>
    %44 = arith.mulf %31, %43 : vector<16x128xf32>
    %45 = arith.truncf %44 : vector<16x128xf32> to vector<16x128xbf16>
    %c0_18 = arith.constant 0 : index
    %c0_19 = arith.constant 0 : index
    %46 = vector.load %arg8[%c0_18, %c0_19] : memref<16x128xbf16, #tpu.memory_space<vmem>>, vector<16x128xbf16>
    tpu.vector_store %arg8[%c0_18, %c0_19], %45 {strides = array<i32>} : memref<16x128xbf16, #tpu.memory_space<vmem>>, vector<16x128xbf16>,
    return
  }
  func.func @transform_0(%arg0: i32, %arg1: i32, %arg2: i32) -> (i32, i32) {
    %c0_i32 = arith.constant 0 : i32
    return %arg0, %arg2 : i32, i32
  }
  func.func @transform_1(%arg0: i32, %arg1: i32, %arg2: i32) -> (i32, i32) {
    %c0_i32 = arith.constant 0 : i32
    return %arg2, %arg1 : i32, i32
  }
  func.func @transform_2(%arg0: i32, %arg1: i32, %arg2: i32) -> (i32, i32) {
    %c0_i32 = arith.constant 0 : i32
    %c0_i32_0 = arith.constant 0 : i32
    return %c0_i32, %arg1 : i32, i32
  }
  func.func @transform_3(%arg0: i32, %arg1: i32, %arg2: i32) -> (i32, i32) {
    %c0_i32 = arith.constant 0 : i32
    %c0_i32_0 = arith.constant 0 : i32
    return %c0_i32, %arg2 : i32, i32
  }
  func.func @transform_4(%arg0: i32, %arg1: i32, %arg2: i32) -> (i32, i32) {
    %c0_i32 = arith.constant 0 : i32
    %c0_i32_0 = arith.constant 0 : i32
    return %c0_i32, %arg2 : i32, i32
  }
  func.func @transform_5(%arg0: i32, %arg1: i32, %arg2: i32) -> (i32, i32) {
    %c0_i32 = arith.constant 0 : i32
    return %arg0, %arg1 : i32, i32
  }
}

module attributes {stable_mosaic.version = 11 : i64} {
  func.func @_head_kernel(%arg0: i32, %arg1: memref<8x32xbf16, #tpu.memory_space<vmem>>, %arg2: memref<1x32xf32, #tpu.memory_space<vmem>>, %arg3: memref<1x32xf32, #tpu.memory_space<vmem>>, %arg4: memref<32x128xbf16, #tpu.memory_space<vmem>>, %arg5: memref<1x128xf32, #tpu.memory_space<vmem>>, %arg6: memref<8x32xf32, #tpu.memory_space<vmem>>, %arg7: memref<8x128xf32, #tpu.memory_space<vmem>>, %arg8: memref<8x32xf32, #tpu.memory_space<vmem>>) attributes {dimension_semantics = [#tpu.dimension_semantics<arbitrary>], iteration_bounds = array<i64: 1>, scalar_prefetch = 0 : i64, scratch_operands = 1 : i64, tpu.core_type = #tpu.core_type<tc>, window_params = [{pipeline_mode = #tpu.pipeline_mode<synchronous>, transform_indices = @transform_0, window_bounds = array<i64: 8, 32>}, {pipeline_mode = #tpu.pipeline_mode<synchronous>, transform_indices = @transform_1, window_bounds = array<i64: 1, 32>}, {pipeline_mode = #tpu.pipeline_mode<synchronous>, transform_indices = @transform_2, window_bounds = array<i64: 1, 32>}, {transform_indices = @transform_3, window_bounds = array<i64: 32, 128>}, {transform_indices = @transform_4, window_bounds = array<i64: 1, 128>}, {pipeline_mode = #tpu.pipeline_mode<synchronous>, transform_indices = @transform_5, window_bounds = array<i64: 8, 32>}, {transform_indices = @transform_6, window_bounds = array<i64: 8, 128>}]} {
    %c0_i32 = arith.constant 0 : i32
    %0 = arith.cmpi eq, %arg0, %c0_i32 : i32
    %1 = arith.extui %0 : i1 to i32
    %c0_i32_0 = arith.constant 0 : i32
    %2 = arith.cmpi ne, %1, %c0_i32_0 : i32
    scf.if %2 {
      %c0_8 = arith.constant 0 : index
      %c0_9 = arith.constant 0 : index
      %11 = vector.load %arg1[%c0_8, %c0_9] : memref<8x32xbf16, #tpu.memory_space<vmem>>, vector<8x32xbf16>
      %12 = arith.extf %11 : vector<8x32xbf16> to vector<8x32xf32>
      %cst_10 = arith.constant dense<0.000000e+00> : vector<8xf32>
      %13 = vector.multi_reduction <add>, %12, %cst_10 [1] : vector<8x32xf32> to vector<8xf32>
      %14 = vector.shape_cast %13 : vector<8xf32> to vector<8x1xf32>
      %cst_11 = arith.constant 3.200000e+01 : f32
      %15 = vector.broadcast %cst_11 : f32 to vector<8x1xf32>
      %16 = arith.divf %14, %15 : vector<8x1xf32>
      %17 = vector.broadcast %16 : vector<8x1xf32> to vector<8x32xf32>
      %18 = arith.subf %12, %17 : vector<8x32xf32>
      %19 = arith.mulf %18, %18 : vector<8x32xf32>
      %cst_12 = arith.constant dense<0.000000e+00> : vector<8xf32>
      %20 = vector.multi_reduction <add>, %19, %cst_12 [1] : vector<8x32xf32> to vector<8xf32>
      %21 = vector.shape_cast %20 : vector<8xf32> to vector<8x1xf32>
      %cst_13 = arith.constant 3.200000e+01 : f32
      %22 = vector.broadcast %cst_13 : f32 to vector<8x1xf32>
      %23 = arith.divf %21, %22 : vector<8x1xf32>
      %24 = vector.broadcast %16 : vector<8x1xf32> to vector<8x32xf32>
      %25 = arith.subf %12, %24 : vector<8x32xf32>
      %cst_14 = arith.constant 9.99999997E-7 : f32
      %26 = vector.broadcast %cst_14 : f32 to vector<8x1xf32>
      %27 = arith.addf %23, %26 : vector<8x1xf32>
      %28 = math.rsqrt %27 : vector<8x1xf32>
      %29 = vector.broadcast %28 : vector<8x1xf32> to vector<8x32xf32>
      %30 = arith.mulf %25, %29 : vector<8x32xf32>
      %c0_15 = arith.constant 0 : index
      %c0_16 = arith.constant 0 : index
      %31 = vector.load %arg2[%c0_15, %c0_16] : memref<1x32xf32, #tpu.memory_space<vmem>>, vector<1x32xf32>
      %32 = vector.broadcast %31 : vector<1x32xf32> to vector<8x32xf32>
      %33 = arith.mulf %30, %32 : vector<8x32xf32>
      %c0_17 = arith.constant 0 : index
      %c0_18 = arith.constant 0 : index
      %34 = vector.load %arg3[%c0_17, %c0_18] : memref<1x32xf32, #tpu.memory_space<vmem>>, vector<1x32xf32>
      %35 = vector.broadcast %34 : vector<1x32xf32> to vector<8x32xf32>
      %36 = arith.addf %33, %35 : vector<8x32xf32>
      %c0_19 = arith.constant 0 : index
      %c0_20 = arith.constant 0 : index
      %37 = vector.load %arg8[%c0_19, %c0_20] : memref<8x32xf32, #tpu.memory_space<vmem>>, vector<8x32xf32>
      tpu.vector_store %arg8[%c0_19, %c0_20], %36 {strides = array<i32>} : memref<8x32xf32, #tpu.memory_space<vmem>>, vector<8x32xf32>,
      %38 = arith.mulf %36, %36 : vector<8x32xf32>
      %cst_21 = arith.constant dense<0.000000e+00> : vector<8xf32>
      %39 = vector.multi_reduction <add>, %38, %cst_21 [1] : vector<8x32xf32> to vector<8xf32>
      %40 = vector.shape_cast %39 : vector<8xf32> to vector<8x1xf32>
      %41 = math.sqrt %40 : vector<8x1xf32>
      %cst_22 = arith.constant 9.99999997E-7 : f32
      %42 = vector.broadcast %cst_22 : f32 to vector<8x1xf32>
      %43 = arith.addf %41, %42 : vector<8x1xf32>
      %44 = vector.broadcast %43 : vector<8x1xf32> to vector<8x32xf32>
      %45 = arith.divf %36, %44 : vector<8x32xf32>
      %c0_23 = arith.constant 0 : index
      %c0_24 = arith.constant 0 : index
      %46 = vector.load %arg6[%c0_23, %c0_24] : memref<8x32xf32, #tpu.memory_space<vmem>>, vector<8x32xf32>
      tpu.vector_store %arg6[%c0_23, %c0_24], %45 {strides = array<i32>} : memref<8x32xf32, #tpu.memory_space<vmem>>, vector<8x32xf32>,
    } else {
    }
    %c0 = arith.constant 0 : index
    %c0_1 = arith.constant 0 : index
    %3 = vector.load %arg8[%c0, %c0_1] : memref<8x32xf32, #tpu.memory_space<vmem>>, vector<8x32xf32>
    %4 = arith.truncf %3 : vector<8x32xf32> to vector<8x32xbf16>
    %c0_2 = arith.constant 0 : index
    %c0_3 = arith.constant 0 : index
    %5 = vector.load %arg4[%c0_2, %c0_3] : memref<32x128xbf16, #tpu.memory_space<vmem>>, vector<32x128xbf16>
    %cst = arith.constant dense<0.000000e+00> : vector<8x128xf32>
    %6 = tpu.matmul %4, %5, %cst {dimension_numbers = #tpu.dot_dimension_numbers<[1], [0], [0], [1], [0, 0, 1, 1], [], []>} : vector<8x32xbf16>, vector<32x128xbf16>, vector<8x128xf32> -> vector<8x128xf32>
    %c0_4 = arith.constant 0 : index
    %c0_5 = arith.constant 0 : index
    %7 = vector.load %arg5[%c0_4, %c0_5] : memref<1x128xf32, #tpu.memory_space<vmem>>, vector<1x128xf32>
    %8 = vector.broadcast %7 : vector<1x128xf32> to vector<8x128xf32>
    %9 = arith.addf %6, %8 : vector<8x128xf32>
    %c0_6 = arith.constant 0 : index
    %c0_7 = arith.constant 0 : index
    %10 = vector.load %arg7[%c0_6, %c0_7] : memref<8x128xf32, #tpu.memory_space<vmem>>, vector<8x128xf32>
    tpu.vector_store %arg7[%c0_6, %c0_7], %9 {strides = array<i32>} : memref<8x128xf32, #tpu.memory_space<vmem>>, vector<8x128xf32>,
    return
  }
  func.func @transform_0(%arg0: i32) -> (i32, i32) {
    %c0_i32 = arith.constant 0 : i32
    %c0_i32_0 = arith.constant 0 : i32
    %c0_i32_1 = arith.constant 0 : i32
    return %c0_i32, %c0_i32_0 : i32, i32
  }
  func.func @transform_1(%arg0: i32) -> (i32, i32) {
    %c0_i32 = arith.constant 0 : i32
    %c0_i32_0 = arith.constant 0 : i32
    %c0_i32_1 = arith.constant 0 : i32
    return %c0_i32, %c0_i32_0 : i32, i32
  }
  func.func @transform_2(%arg0: i32) -> (i32, i32) {
    %c0_i32 = arith.constant 0 : i32
    %c0_i32_0 = arith.constant 0 : i32
    %c0_i32_1 = arith.constant 0 : i32
    return %c0_i32, %c0_i32_0 : i32, i32
  }
  func.func @transform_3(%arg0: i32) -> (i32, i32) {
    %c0_i32 = arith.constant 0 : i32
    %c0_i32_0 = arith.constant 0 : i32
    return %c0_i32, %arg0 : i32, i32
  }
  func.func @transform_4(%arg0: i32) -> (i32, i32) {
    %c0_i32 = arith.constant 0 : i32
    %c0_i32_0 = arith.constant 0 : i32
    return %c0_i32, %arg0 : i32, i32
  }
  func.func @transform_5(%arg0: i32) -> (i32, i32) {
    %c0_i32 = arith.constant 0 : i32
    %c0_i32_0 = arith.constant 0 : i32
    %c0_i32_1 = arith.constant 0 : i32
    return %c0_i32, %c0_i32_0 : i32, i32
  }
  func.func @transform_6(%arg0: i32) -> (i32, i32) {
    %c0_i32 = arith.constant 0 : i32
    %c0_i32_0 = arith.constant 0 : i32
    return %c0_i32, %arg0 : i32, i32
  }
}

</mosaic_0001>

<llo_original>
// kernel: vit_image_retrieval_forward.15
$region0: #{vit_image_retrieval_forward.15}
  #allocation0 [shape = 'u32[]', space=smem, size = 0x4, offset = 0x4, fixed_abs, tag = 'smem constant byte address 0x4 - core index']
  #allocation1 [shape = 'u32[72,128]{1,0:T(1,128)}', space=vmem, size = 0x9000, scoped, tag = 'internal scratch']
  %s0 = inlined_call_operand.vmem [shape: bf16[16,32], index: 0, kind: input, shape index: {}]
  %s1 = inlined_call_operand.vmem [shape: bf16[32,128], index: 1, kind: input, shape index: {}]
  %s2 = inlined_call_operand.vmem [shape: f32[1,128], index: 2, kind: input, shape index: {}]
  %s3 = inlined_call_operand.vmem [shape: bf16[16,128], index: 3, kind: input, shape index: {}]
  %s4 = inlined_call_operand.vmem [shape: bf16[16,128], index: 4, kind: output, shape index: {}]
  %s5 = sld [smem:[#allocation0]]
  $region26: #{vit_image_retrieval_forward.15} parent=0
    _
  %s7 = ssub.s32 1, %s5
  %s8 = scalar_select 0, %s7, %s5
  // Predicated region
  $region2: #{vit_image_retrieval_forward.15} parent=0 // pred_check
    _
  $region3: #{vit_image_retrieval_forward.15} parent=0 // pred_check_branch
    %10 = sbr.rel (0) target = $region5
  $region4: #{vit_image_retrieval_forward.15} parent=0 // pred_region
    _
  $region5: #{vit_image_retrieval_forward.15} parent=0 // pred_fallthru
    _
  // Predicated region
  $region6: #{vit_image_retrieval_forward.15} parent=0 // pred_check
    _
  $region7: #{vit_image_retrieval_forward.15} parent=0 // pred_check_branch
    %12 = sbr.rel (0) target = $region9
  $region8: #{vit_image_retrieval_forward.15} parent=0 // pred_region
    _
  $region9: #{vit_image_retrieval_forward.15} parent=0 // pred_fallthru
    _
  // Predicated region
  $region10: #{vit_image_retrieval_forward.15} parent=0 // pred_check
    _
  $region11: #{vit_image_retrieval_forward.15} parent=0 // pred_check_branch
    %14 = sbr.rel (0) target = $region13
  $region12: #{vit_image_retrieval_forward.15} parent=0 // pred_region
    _
  $region13: #{vit_image_retrieval_forward.15} parent=0 // pred_fallthru
    _
  // Predicated region
  $region14: #{vit_image_retrieval_forward.15} parent=0 // pred_check
    _
  $region15: #{vit_image_retrieval_forward.15} parent=0 // pred_check_branch
    %16 = sbr.rel (0) target = $region17
  $region16: #{vit_image_retrieval_forward.15} parent=0 // pred_region
    _
  $region17: #{vit_image_retrieval_forward.15} parent=0 // pred_fallthru
    _
  %v18 = vld [vmem:[%s0] sm:$0xf]
  %v19 = vld [vmem:[%s0 + $0x4] sm:$0xf]
  %v20 = vld [vmem:[%s1] sm:$0xf]
  %v21 = vld [vmem:[%s1 + $0x4] sm:$0xf]
  %v22 = vld [vmem:[%s1 + $0x8] sm:$0xf]
  %v23 = vld [vmem:[%s1 + $0xc] sm:$0xf]
  %v24 = vld [vmem:[%s2] sm:$0x1]
  %v26 = vperm.slane %v24, 0
  %v30 = vunpack.c.l.b16 %v18
  %v31 = vunpack.c.l.b16 %v19
  %v32 = vpack.c.b16 %v31, %v30
  %v37 = vunpack.c.l.b16 %v20
  %v38 = vunpack.c.l.b16 %v21
  %v39 = vunpack.c.l.b16 %v22
  %v40 = vunpack.c.l.b16 %v23
  %v41 = vpack.c.b16 %v38, %v37
  %v42 = vpack.c.b16 %v40, %v39
  %vm45 = vcmask 261120
  %v47 = vsel %vm45, %v32, 0
  %49 = vmatpush.bf16.msra.mxu0 0
  %50 = vmatpush.bf16.msra.mxu0 0
  %51 = vmatpush.bf16.msra.mxu0 0
  %52 = vmatpush.bf16.msra.mxu0 0
  %53 = vmatpush.bf16.msra.mxu0 0
  %54 = vmatpush.bf16.msra.mxu0 0
  %55 = vmatpush.bf16.msra.mxu0 %v42
  %56 = vmatpush.bf16.msra.mxu0 %v41
  %57 = vmatmul.bf16.gmra.mxu0 %v47
  %v58 = vpop.f32.mrf.mxu0
  %v59 = vadd.f32 %v26, %v58
  %v60 = vpop.f32.mrf.mxu0
  %v61 = vadd.f32 %v26, %v60
  %62 = vdwg.mxu0
  %v63 = vld [vmem:[%s3] sm:$0xf]
  %v64 = vld [vmem:[%s3 + $0x4] sm:$0xf]
  %v65 = vunpack.c.l.bf16 %v63
  %v66 = vunpack.c.l.bf16 %v64
  %v67 = vadd.f32 %v59, %v65
  %v68 = vadd.f32 %v61, %v66
  %v69 = vpack.c.bf16 %v67, %v67
  %v70 = vpack.c.bf16 %v68, %v68
  %71 = vst [vmem:[%s4] sm:$0xf] %v69
  %72 = vst [vmem:[%s4 + $0x4] sm:$0xf] %v70
  // Predicated region
  $region18: #{vit_image_retrieval_forward.15} parent=0 // pred_check
    _
  $region19: #{vit_image_retrieval_forward.15} parent=0 // pred_check_branch
    %74 = sbr.rel (0) target = $region21
  $region20: #{vit_image_retrieval_forward.15} parent=0 // pred_region
    _
  $region21: #{vit_image_retrieval_forward.15} parent=0 // pred_fallthru
    _
  // Predicated region
  $region22: #{vit_image_retrieval_forward.15} parent=0 // pred_check
    _
  $region23: #{vit_image_retrieval_forward.15} parent=0 // pred_check_branch
    %76 = sbr.rel (0) target = $region25
  $region24: #{vit_image_retrieval_forward.15} parent=0 // pred_region
    _
  $region25: #{vit_image_retrieval_forward.15} parent=0 // pred_fallthru
    _

// kernel: vit_image_retrieval_forward.13
$region0: #{vit_image_retrieval_forward.13}
  #allocation0 [shape = 'u32[]', space=smem, size = 0x4, offset = 0x4, fixed_abs, tag = 'smem constant byte address 0x4 - core index']
  #allocation1 [shape = 'u32[72,128]{1,0:T(1,128)}', space=vmem, size = 0x9000, scoped, tag = 'internal scratch']
  %s0 = inlined_call_operand.vmem [shape: bf16[16,32], index: 0, kind: input, shape index: {}]
  %s1 = inlined_call_operand.vmem [shape: bf16[32,128], index: 1, kind: input, shape index: {}]
  %s2 = inlined_call_operand.vmem [shape: f32[1,128], index: 2, kind: input, shape index: {}]
  %s3 = inlined_call_operand.vmem [shape: f32[1,32], index: 3, kind: input, shape index: {}]
  %s4 = inlined_call_operand.vmem [shape: f32[1,32], index: 4, kind: input, shape index: {}]
  %s5 = inlined_call_operand.vmem [shape: bf16[16,128], index: 5, kind: output, shape index: {}]
  %s6 = sld [smem:[#allocation0]]
  $region30: #{vit_image_retrieval_forward.13} parent=0
    _
  %s8 = ssub.s32 1, %s6
  %s9 = scalar_select 0, %s8, %s6
  // Predicated region
  $region2: #{vit_image_retrieval_forward.13} parent=0 // pred_check
    _
  $region3: #{vit_image_retrieval_forward.13} parent=0 // pred_check_branch
    %11 = sbr.rel (0) target = $region5
  $region4: #{vit_image_retrieval_forward.13} parent=0 // pred_region
    _
  $region5: #{vit_image_retrieval_forward.13} parent=0 // pred_fallthru
    _
  // Predicated region
  $region6: #{vit_image_retrieval_forward.13} parent=0 // pred_check
    _
  $region7: #{vit_image_retrieval_forward.13} parent=0 // pred_check_branch
    %13 = sbr.rel (0) target = $region9
  $region8: #{vit_image_retrieval_forward.13} parent=0 // pred_region
    _
  $region9: #{vit_image_retrieval_forward.13} parent=0 // pred_fallthru
    _
  // Predicated region
  $region10: #{vit_image_retrieval_forward.13} parent=0 // pred_check
    _
  $region11: #{vit_image_retrieval_forward.13} parent=0 // pred_check_branch
    %15 = sbr.rel (0) target = $region13
  $region12: #{vit_image_retrieval_forward.13} parent=0 // pred_region
    _
  $region13: #{vit_image_retrieval_forward.13} parent=0 // pred_fallthru
    _
  // Predicated region
  $region14: #{vit_image_retrieval_forward.13} parent=0 // pred_check
    _
  $region15: #{vit_image_retrieval_forward.13} parent=0 // pred_check_branch
    %17 = sbr.rel (0) target = $region17
  $region16: #{vit_image_retrieval_forward.13} parent=0 // pred_region
    _
  $region17: #{vit_image_retrieval_forward.13} parent=0 // pred_fallthru
    _
  // Predicated region
  $region18: #{vit_image_retrieval_forward.13} parent=0 // pred_check
    _
  $region19: #{vit_image_retrieval_forward.13} parent=0 // pred_check_branch
    %19 = sbr.rel (0) target = $region21
  $region20: #{vit_image_retrieval_forward.13} parent=0 // pred_region
    _
  $region21: #{vit_image_retrieval_forward.13} parent=0 // pred_fallthru
    _
  %v21 = vld [vmem:[%s0] sm:$0xf]
  %v22 = vld [vmem:[%s0 + $0x4] sm:$0xf]
  %v23 = vunpack.c.l.bf16 %v21
  %v24 = vunpack.c.l.bf16 %v22
  %vm25 = vcmask 261120
  %v26 = vsel %vm25, %v23, 0.0
  %27 = vadd.xlane.f32.xlu0 %v26
  %v28 = vpop.xlane.xlu0 %27
  %v29 = vsel %vm25, %v24, 0.0
  %30 = vadd.xlane.f32.xlu0 %v29
  %v31 = vpop.xlane.xlu0 %30
  %v32 = vrcp.pop 32.0
  %v33 = vmul.f32 32.0, %v32
  %v34 = vsub.f32 1.0, %v33
  %v35 = vmul.f32 %v32, %v34
  %v36 = vadd.f32 %v32, %v35
  %vm37 = vweird.f32 %v32
  %v38 = vsel %vm37, %v32, %v36
  %v39 = vmul.f32 %v28, %v38
  %v40 = vmul.f32 %v31, %v38
  %v41 = vsub.f32 %v23, %v39
  %v42 = vsub.f32 %v24, %v40
  %v43 = vmul.f32 %v41, %v41
  %v44 = vmul.f32 %v42, %v42
  %v45 = vsel %vm25, %v43, 0.0
  %46 = vadd.xlane.f32.xlu0 %v45
  %v47 = vpop.xlane.xlu0 %46
  %v48 = vsel %vm25, %v44, 0.0
  %49 = vadd.xlane.f32.xlu0 %v48
  %v50 = vpop.xlane.xlu0 %49
  %v51 = vmul.f32 %v47, %v38
  %v52 = vmul.f32 %v50, %v38
  %v53 = vadd.f32 %v51, 1e-06
  %v54 = vadd.f32 %v52, 1e-06
  %v55 = vrsqrt.pop %v53
  %v56 = vmul.f32 %v55, %v53
  %v57 = vmul.f32 %v56, %v55
  %v58 = vmul.f32 0.5, %v57
  %v59 = vsub.f32 1.5, %v58
  %v60 = vmul.f32 %v55, %v59
  %vm61 = vweird.f32 %v53
  %vm62 = vweird.f32 %v55
  %vm63 = vmor %vm61, %vm62
  %v64 = vsel %vm63, %v55, %v60
  %v65 = vrsqrt.pop %v54
  %v66 = vmul.f32 %v65, %v54
  %v67 = vmul.f32 %v66, %v65
  %v68 = vmul.f32 0.5, %v67
  %v69 = vsub.f32 1.5, %v68
  %v70 = vmul.f32 %v65, %v69
  %vm71 = vweird.f32 %v54
  %vm72 = vweird.f32 %v65
  %vm73 = vmor %vm71, %vm72
  %v74 = vsel %vm73, %v65, %v70
  %v75 = vmul.f32 %v41, %v64
  %v76 = vmul.f32 %v42, %v74
  %v77 = vld [vmem:[%s3] sm:$0x1]
  %v79 = vperm.slane %v77, 0
  %v81 = vmul.f32 %v75, %v79
  %v82 = vmul.f32 %v76, %v79
  %v83 = vld [vmem:[%s4] sm:$0x1]
  %v85 = vperm.slane %v83, 0
  %v87 = vadd.f32 %v81, %v85
  %v88 = vadd.f32 %v82, %v85
  %v89 = vpack.c.bf16 %v88, %v87
  %v90 = vld [vmem:[%s1] sm:$0xf]
  %v91 = vld [vmem:[%s1 + $0x4] sm:$0xf]
  %v92 = vld [vmem:[%s1 + $0x8] sm:$0xf]
  %v93 = vld [vmem:[%s1 + $0xc] sm:$0xf]
  %v94 = vld [vmem:[%s2] sm:$0x1]
  %v96 = vperm.slane %v94, 0
  %v102 = vunpack.c.l.b16 %v90
  %v103 = vunpack.c.l.b16 %v91
  %v104 = vunpack.c.l.b16 %v92
  %v105 = vunpack.c.l.b16 %v93
  %v106 = vpack.c.b16 %v103, %v102
  %v107 = vpack.c.b16 %v105, %v104
  %v111 = vsel %vm25, %v89, 0
  %113 = vmatpush.bf16.msra.mxu0 0
  %114 = vmatpush.bf16.msra.mxu0 0
  %115 = vmatpush.bf16.msra.mxu0 0
  %116 = vmatpush.bf16.msra.mxu0 0
  %117 = vmatpush.bf16.msra.mxu0 0
  %118 = vmatpush.bf16.msra.mxu0 0
  %119 = vmatpush.bf16.msra.mxu0 %v107
  %120 = vmatpush.bf16.msra.mxu0 %v106
  %121 = vmatmul.bf16.gmra.mxu0 %v111
  %v122 = vpop.f32.mrf.mxu0
  %v123 = vadd.f32 %v96, %v122
  %v124 = vpop.f32.mrf.mxu0
  %v125 = vadd.f32 %v96, %v124
  %126 = vdwg.mxu0
  %v127 = vpack.c.bf16 %v123, %v123
  %v128 = vpack.c.bf16 %v125, %v125
  %129 = vst [vmem:[%s5] sm:$0xf] %v127
  %130 = vst [vmem:[%s5 + $0x4] sm:$0xf] %v128
  // Predicated region
  $region22: #{vit_image_retrieval_forward.13} parent=0 // pred_check
    _
  $region23: #{vit_image_retrieval_forward.13} parent=0 // pred_check_branch
    %132 = sbr.rel (0) target = $region25
  $region24: #{vit_image_retrieval_forward.13} parent=0 // pred_region
    _
  $region25: #{vit_image_retrieval_forward.13} parent=0 // pred_fallthru
    _
  // Predicated region
  $region26: #{vit_image_retrieval_forward.13} parent=0 // pred_check
    _
  $region27: #{vit_image_retrieval_forward.13} parent=0 // pred_check_branch
    %134 = sbr.rel (0) target = $region29
  $region28: #{vit_image_retrieval_forward.13} parent=0 // pred_region
    _
  $region29: #{vit_image_retrieval_forward.13} parent=0 // pred_fallthru
    _

// kernel: vit_image_retrieval_forward.12
$region0: #{vit_image_retrieval_forward.12}
  #allocation0 [shape = 'u32[]', space=smem, size = 0x4, offset = 0x4, fixed_abs, tag = 'smem constant byte address 0x4 - core index']
  #allocation1 [shape = 'u32[72,128]{1,0:T(1,128)}', space=vmem, size = 0x9000, scoped, tag = 'internal scratch']
  %s0 = inlined_call_operand.vmem [shape: bf16[8,192], index: 0, kind: input, shape index: {}]
  %s1 = inlined_call_operand.vmem [shape: bf16[192,128], index: 1, kind: input, shape index: {}]
  %s2 = inlined_call_operand.vmem [shape: f32[1,128], index: 2, kind: input, shape index: {}]
  %s3 = inlined_call_operand.vmem [shape: bf16[8,128], index: 3, kind: output, shape index: {}]
  %s4 = sld [smem:[#allocation0]]
  $region22: #{vit_image_retrieval_forward.12} parent=0
    _
  %s6 = ssub.s32 1, %s4
  %s7 = scalar_select 0, %s6, %s4
  // Predicated region
  $region2: #{vit_image_retrieval_forward.12} parent=0 // pred_check
    _
  $region3: #{vit_image_retrieval_forward.12} parent=0 // pred_check_branch
    %9 = sbr.rel (0) target = $region5
  $region4: #{vit_image_retrieval_forward.12} parent=0 // pred_region
    _
  $region5: #{vit_image_retrieval_forward.12} parent=0 // pred_fallthru
    _
  // Predicated region
  $region6: #{vit_image_retrieval_forward.12} parent=0 // pred_check
    _
  $region7: #{vit_image_retrieval_forward.12} parent=0 // pred_check_branch
    %11 = sbr.rel (0) target = $region9
  $region8: #{vit_image_retrieval_forward.12} parent=0 // pred_region
    _
  $region9: #{vit_image_retrieval_forward.12} parent=0 // pred_fallthru
    _
  // Predicated region
  $region10: #{vit_image_retrieval_forward.12} parent=0 // pred_check
    _
  $region11: #{vit_image_retrieval_forward.12} parent=0 // pred_check_branch
    %13 = sbr.rel (0) target = $region13
  $region12: #{vit_image_retrieval_forward.12} parent=0 // pred_region
    _
  $region13: #{vit_image_retrieval_forward.12} parent=0 // pred_fallthru
    _
  %v15 = vld [vmem:[%s0] sm:$0xff]
  %v16 = vld [vmem:[%s1] sm:$0xf]
  %v17 = vld [vmem:[%s1 + $0x4] sm:$0xf]
  %v18 = vld [vmem:[%s1 + $0x8] sm:$0xf]
  %v19 = vld [vmem:[%s1 + $0xc] sm:$0xf]
  %v20 = vld [vmem:[%s1 + $0x10] sm:$0xf]
  %v21 = vld [vmem:[%s1 + $0x14] sm:$0xf]
  %v22 = vld [vmem:[%s1 + $0x18] sm:$0xf]
  %v23 = vld [vmem:[%s1 + $0x1c] sm:$0xf]
  %v24 = vld [vmem:[%s1 + $0x20] sm:$0xf]
  %v25 = vld [vmem:[%s1 + $0x24] sm:$0xf]
  %v26 = vld [vmem:[%s1 + $0x28] sm:$0xf]
  %v27 = vld [vmem:[%s1 + $0x2c] sm:$0xf]
  %v28 = vld [vmem:[%s1 + $0x30] sm:$0xf]
  %v29 = vld [vmem:[%s1 + $0x34] sm:$0xf]
  %v30 = vld [vmem:[%s1 + $0x38] sm:$0xf]
  %v31 = vld [vmem:[%s1 + $0x3c] sm:$0xf]
  %v32 = vld [vmem:[%s1 + $0x40] sm:$0xf]
  %v33 = vld [vmem:[%s1 + $0x44] sm:$0xf]
  %v34 = vld [vmem:[%s1 + $0x48] sm:$0xf]
  %v35 = vld [vmem:[%s1 + $0x4c] sm:$0xf]
  %v36 = vld [vmem:[%s1 + $0x50] sm:$0xf]
  %v37 = vld [vmem:[%s1 + $0x54] sm:$0xf]
  %v38 = vld [vmem:[%s1 + $0x58] sm:$0xf]
  %v39 = vld [vmem:[%s1 + $0x5c] sm:$0xf]
  %v40 = vld [vmem:[%s2] sm:$0x1]
  %v42 = vperm.slane %v40, 0
  %v45 = vunpack.c.l.b16 %v15
  %v46 = vunpack.c.h.b16 %v15
  %v47 = vpack.c.b16 %v45, %v45
  %v48 = vpack.c.b16 %v46, %v46
  %v74 = vunpack.c.l.b16 %v16
  %v75 = vunpack.c.l.b16 %v17
  %v76 = vunpack.c.l.b16 %v18
  %v77 = vunpack.c.l.b16 %v19
  %v78 = vunpack.c.l.b16 %v20
  %v79 = vunpack.c.l.b16 %v21
  %v80 = vunpack.c.l.b16 %v22
  %v81 = vunpack.c.l.b16 %v23
  %v82 = vunpack.c.l.b16 %v24
  %v83 = vunpack.c.l.b16 %v25
  %v84 = vunpack.c.l.b16 %v26
  %v85 = vunpack.c.l.b16 %v27
  %v86 = vunpack.c.l.b16 %v28
  %v87 = vunpack.c.l.b16 %v29
  %v88 = vunpack.c.l.b16 %v30
  %v89 = vunpack.c.l.b16 %v31
  %v90 = vunpack.c.l.b16 %v32
  %v91 = vunpack.c.l.b16 %v33
  %v92 = vunpack.c.l.b16 %v34
  %v93 = vunpack.c.l.b16 %v35
  %v94 = vunpack.c.l.b16 %v36
  %v95 = vunpack.c.l.b16 %v37
  %v96 = vunpack.c.l.b16 %v38
  %v97 = vunpack.c.l.b16 %v39
  %v98 = vpack.c.b16 %v75, %v74
  %v99 = vpack.c.b16 %v77, %v76
  %v100 = vpack.c.b16 %v79, %v78
  %v101 = vpack.c.b16 %v81, %v80
  %v102 = vpack.c.b16 %v83, %v82
  %v103 = vpack.c.b16 %v85, %v84
  %v104 = vpack.c.b16 %v87, %v86
  %v105 = vpack.c.b16 %v89, %v88
  %v106 = vpack.c.b16 %v91, %v90
  %v107 = vpack.c.b16 %v93, %v92
  %v108 = vpack.c.b16 %v95, %v94
  %v109 = vpack.c.b16 %v97, %v96
  %vm122 = vcmask 523264
  %v124 = vsel %vm122, %v48, 0
  %126 = vmatpush.bf16.msra.mxu0 %v105
  %127 = vmatpush.bf16.msra.mxu0 %v104
  %128 = vmatpush.bf16.msra.mxu0 %v103
  %129 = vmatpush.bf16.msra.mxu0 %v102
  %130 = vmatpush.bf16.msra.mxu0 %v101
  %131 = vmatpush.bf16.msra.mxu0 %v100
  %132 = vmatpush.bf16.msra.mxu0 %v99
  %133 = vmatpush.bf16.msra.mxu0 %v98
  %134 = vmatmul.bf16.gmra.mxu0 %v47
  %v135 = vpop.f32.mrf.mxu0
  %v136 = vadd.f32 %v42, %v135
  %v137 = vpop.f32.mrf.mxu0
  %138 = vdwg.mxu0
  %139 = vmatpush.bf16.msra.mxu0 0
  %140 = vmatpush.bf16.msra.mxu0 0
  %141 = vmatpush.bf16.msra.mxu0 0
  %142 = vmatpush.bf16.msra.mxu0 0
  %143 = vmatpush.bf16.msra.mxu0 %v109
  %144 = vmatpush.bf16.msra.mxu0 %v108
  %145 = vmatpush.bf16.msra.mxu0 %v107
  %146 = vmatpush.bf16.msra.mxu0 %v106
  %147 = vmatmul.bf16.gmra.mxu0 %v124
  %v148 = vpop.f32.mrf.mxu0
  %v149 = vadd.f32 %v136, %v148
  %v150 = vpop.f32.mrf.mxu0
  %151 = vdwg.mxu0
  %v152 = vpack.c.bf16 %v149, %v149
  %153 = vst [vmem:[%s3] sm:$0xf] %v152
  // Predicated region
  $region14: #{vit_image_retrieval_forward.12} parent=0 // pred_check
    _
  $region15: #{vit_image_retrieval_forward.12} parent=0 // pred_check_branch
    %155 = sbr.rel (0) target = $region17
  $region16: #{vit_image_retrieval_forward.12} parent=0 // pred_region
    _
  $region17: #{vit_image_retrieval_forward.12} parent=0 // pred_fallthru
    _
  // Predicated region
  $region18: #{vit_image_retrieval_forward.12} parent=0 // pred_check
    _
  $region19: #{vit_image_retrieval_forward.12} parent=0 // pred_check_branch
    %157 = sbr.rel (0) target = $region21
  $region20: #{vit_image_retrieval_forward.12} parent=0 // pred_region
    _
  $region21: #{vit_image_retrieval_forward.12} parent=0 // pred_fallthru
    _

// kernel: vit_image_retrieval_forward.14
$region0: #{vit_image_retrieval_forward.14}
  #allocation0 [shape = 'u32[]', space=smem, size = 0x4, offset = 0x4, fixed_abs, tag = 'smem constant byte address 0x4 - core index']
  #allocation1 [shape = 'u32[72,128]{1,0:T(1,128)}', space=vmem, size = 0x9000, scoped, tag = 'internal scratch']
  %s0 = inlined_call_operand.vmem [shape: bf16[2,5,96], index: 0, kind: input, shape index: {}]
  %s1 = inlined_call_operand.vmem [shape: bf16[2,5,32], index: 1, kind: output, shape index: {}]
  %s2 = sld [smem:[#allocation0]]
  $region37: #{vit_image_retrieval_forward.14} parent=0
    _
  %s4 = ssub.s32 1, %s2
  %s5 = scalar_select 0, %s4, %s2
  loop: start=0, step=1, limit=4
  $region2: #{vit_image_retrieval_forward.14} parent=0 // loop_pre_header
    _
  $region3: #{vit_image_retrieval_forward.14} parent=0 // loop_header
    %s7 = sphi 0, %s11
    %p8 = scmp.ge.s32.totalorder %s7, 4
    %s17 = sphi 0, %s19
    %s20 = sphi 0, %s17
    %s21 = sphi 0, %s20
    %s37 = sphi 0, %s21
    %s43 = sphi 0, %s45
    %s46 = sphi 0, %s43
    %s47 = sphi 0, %s46
    %s63 = sphi 0, %s47
  $region4: #{vit_image_retrieval_forward.14} parent=0 // loop_header_branch
    %10 = sbr.rel (%p8) target = $region8
  $region5: #{vit_image_retrieval_forward.14} parent=0 // loop_body
    %s12 = ssub.s32 %s7, 1
    %s13 = ssub.s32 %s7, 2
    %s14 = sadd.s32 %s7, 1
    %s15 = ssub.s32 %s7, %s14
    %p16 = scmp.eq.s32.totalorder %s15, 0
    %s18 = sadd.s32 %s17, 1
    %s19 = scalar_select %p16, %s17, %s18
    %p22 = pneg %p16
    %p23 = scmp.eq.s32.totalorder %s7, 1
    %p24 = por %p22, %p23
    %p25 = scmp.ne.s32.totalorder %s17, %s20
    %p26 = scmp.eq.s32.totalorder %s7, 0
    %p27 = por %p25, %p26
    %p28 = scmp.ne.s32.totalorder %s17, %s20
    %p29 = scmp.eq.s32.totalorder %s12, 1
    %p30 = por %p28, %p29
    %p31 = scmp.ne.s32.totalorder %s20, %s21
    %p32 = scmp.eq.s32.totalorder %s12, 0
    %p33 = por %p31, %p32
    %p34 = scmp.ne.s32.totalorder %s20, %s21
    %p35 = scmp.eq.s32.totalorder %s13, 1
    %p36 = por %p34, %p35
    %p38 = scmp.ne.s32.totalorder %s21, %s37
    %p39 = scmp.eq.s32.totalorder %s13, 0
    %p40 = por %p38, %p39
    %s41 = ssub.s32 %s7, %s14
    %p42 = scmp.eq.s32.totalorder %s41, 0
    %s44 = sadd.s32 %s43, 1
    %s45 = scalar_select %p42, %s43, %s44
    %p48 = pneg %p42
    %p49 = scmp.eq.s32.totalorder %s7, 1
    %p50 = por %p48, %p49
    %p51 = scmp.ne.s32.totalorder %s43, %s46
    %p52 = scmp.eq.s32.totalorder %s7, 0
    %p53 = por %p51, %p52
    %p54 = scmp.ne.s32.totalorder %s43, %s46
    %p55 = scmp.eq.s32.totalorder %s12, 1
    %p56 = por %p54, %p55
    %p57 = scmp.ne.s32.totalorder %s46, %s47
    %p58 = scmp.eq.s32.totalorder %s12, 0
    %p59 = por %p57, %p58
    %p60 = scmp.ne.s32.totalorder %s46, %s47
    %p61 = scmp.eq.s32.totalorder %s13, 1
    %p62 = por %p60, %p61
    %p64 = scmp.ne.s32.totalorder %s47, %s63
    %p65 = scmp.eq.s32.totalorder %s13, 0
    %p66 = por %p64, %p65
    %p67 = scmp.le.s32.totalorder 1, %s7
    %p68 = scmp.lt.s32.totalorder %s7, 3
    %p69 = pnand %p67, %p68
    %p70 = pneg %p69
    // Predicated region
    $region9: #{vit_image_retrieval_forward.14} parent=5 // pred_check
      _
    $region10: #{vit_image_retrieval_forward.14} parent=5 // pred_check_branch
      %72 = sbr.rel (%p69) target = $region12
    $region11: #{vit_image_retrieval_forward.14} parent=5 // pred_region
      %s73 = ssub.s32 %s7, 1
    $region12: #{vit_image_retrieval_forward.14} parent=5 // pred_fallthru
      _
    %p74 = scmp.lt.s32.totalorder %s7, 2
    // Predicated region
    $region13: #{vit_image_retrieval_forward.14} parent=5 // pred_check
      %p75 = pneg %p74
    $region14: #{vit_image_retrieval_forward.14} parent=5 // pred_check_branch
      %77 = sbr.rel (%p75) target = $region16
    $region15: #{vit_image_retrieval_forward.14} parent=5 // pred_region
      // Predicated region
      $region17: #{vit_image_retrieval_forward.14} parent=15 // pred_check
        %p78 = pneg %p27
      $region18: #{vit_image_retrieval_forward.14} parent=15 // pred_check_branch
        %80 = sbr.rel (%p78) target = $region20
      $region19: #{vit_image_retrieval_forward.14} parent=15 // pred_region
        %p81 = scmp.lt.s32.totalorder %s7, 1
        %s82 = scalar_select %p81, %s7, 1
        %s83 = smul.addr %s82, 4
        %s84 = scalar_lea.vmem %s0, %s83
      $region20: #{vit_image_retrieval_forward.14} parent=15 // pred_fallthru
        _
    $region16: #{vit_image_retrieval_forward.14} parent=5 // pred_fallthru
      _
    %p85 = scmp.le.s32.totalorder 1, %s7
    %p86 = scmp.lt.s32.totalorder %s7, 3
    %p87 = pnand %p85, %p86
    %p88 = pneg %p87
    // Predicated region
    $region21: #{vit_image_retrieval_forward.14} parent=5 // pred_check
      _
    $region22: #{vit_image_retrieval_forward.14} parent=5 // pred_check_branch
      %90 = sbr.rel (%p87) target = $region24
    $region23: #{vit_image_retrieval_forward.14} parent=5 // pred_region
      %s91 = ssub.s32 %s7, 1
      %p92 = scmp.lt.s32.totalorder %s12, 1
      %s93 = scalar_select %p92, %s12, 1
      %s94 = smul.addr %s93, 4
      %s95 = scalar_lea.vmem %s0, %s94
      %p96 = pneg %p33
      %p97 = pneg %p30
      %p98 = pneg %p59
      %p99 = pneg %p56
      %p100 = scmp.lt.s32.totalorder %s12, 1
      %s101 = scalar_select %p100, %s12, 1
      %s102 = smul.addr %s101, 4
      %s103 = scalar_lea.vmem %s1, %s102
      %p104 = scmp.lt.s32.totalorder %s12, 1
      %s105 = scalar_select %p104, %s12, 1
      %s106 = smul.addr %s105, 4
      %s107 = scalar_lea.vmem %s0, %s106
      %p108 = scmp.lt.s32.totalorder %s12, 1
      %s109 = scalar_select %p108, %s12, 1
      %s110 = smul.addr %s109, 4
      %s111 = scalar_lea.vmem %s1, %s110
      %v113 = vld [vmem:[%s107] sm:$0x7]
      %v115 = vunpack.c.l.b16 %v113
      %v116 = vpack.c.b16 %v115, %v115
      %117 = vrot.lane.b32.xlu0 %v116, 96
      %v118 = vpop.permute.xlu0 %117
      %vm119 = vcmask 64512
      %v121 = vsel %vm119, %v113, 0
      %v124 = vsel %vm119, %v118, 0
      %126 = vmatpush.bf16.xpose.msra.mxu0 0
      %127 = vmatpush.bf16.xpose.msra.mxu0 0
      %128 = vmatpush.bf16.xpose.msra.mxu0 0
      %129 = vmatpush.bf16.xpose.msra.mxu0 0
      %130 = vmatpush.bf16.xpose.msra.mxu0 0
      %131 = vmatpush.bf16.xpose.msra.mxu0 0
      %132 = vmatpush.bf16.xpose.msra.mxu0 0
      %133 = vmatpush.bf16.xpose.msra.mxu0 %v124
      %134 = vmatmul.bf16.gmra.mxu0 %v121
      %v135 = vpop.f32.mrf.mxu0
      %v136 = vadd.f32 0.0, %v135
      %v137 = vpop.f32.mrf.mxu0
      %138 = vdwg.mxu0
      %vm139 = vcmask 36864
      %v140 = vsel %vm139, %v136, -inf
      %141 = vmax.xlane.f32.xlu0 %v140
      %v142 = vpop.xlane.xlu0 %141
      %v143 = vsub.f32 %v136, %v142
      %v144 = vmul.f32 %v143, 1.442695
      %v145 = vpow.pop %v144
      %v146 = vsel %vm139, %v145, 0.0
      %147 = vadd.xlane.f32.xlu0 %v146
      %v148 = vpop.xlane.xlu0 %147
      %v149 = vpack.c.bf16 %v145, %v145
      %150 = vrot.lane.b32.xlu0 %v116, 64
      %v151 = vpop.permute.xlu0 %150
      %vm152 = vcmask 39936
      %v154 = vsel %vm152, %v149, 0
      %vm156 = vcmask 1041408
      %vm157 = vcmask 1042432
      %v158 = vsel %vm156, 4294967295, 65535
      %v159 = vsel %vm157, %v158, 0
      %v161 = vand.u32 %v151, %v159
      %163 = vmatpush.bf16.msra.mxu0 0
      %164 = vmatpush.bf16.msra.mxu0 0
      %165 = vmatpush.bf16.msra.mxu0 0
      %166 = vmatpush.bf16.msra.mxu0 0
      %167 = vmatpush.bf16.msra.mxu0 0
      %168 = vmatpush.bf16.msra.mxu0 0
      %169 = vmatpush.bf16.msra.mxu0 0
      %170 = vmatpush.bf16.msra.mxu0 %v161
      %171 = vmatmul.bf16.gmra.mxu0 %v154
      %v172 = vpop.f32.mrf.mxu0
      %v173 = vadd.f32 0.0, %v172
      %v174 = vpop.f32.mrf.mxu0
      %175 = vdwg.mxu0
      %v176 = vrcp.pop %v148
      %v177 = vmul.f32 %v173, %v176
      %178 = vrot.lane.b32.xlu0 %v116, 120
      %v179 = vpop.permute.xlu0 %178
      %180 = vrot.lane.b32.xlu0 %v116, 88
      %v181 = vpop.permute.xlu0 %180
      %v183 = vsel %vm119, %v179, 0
      %v186 = vsel %vm119, %v181, 0
      %188 = vmatpush.bf16.xpose.msra.mxu0 0
      %189 = vmatpush.bf16.xpose.msra.mxu0 0
      %190 = vmatpush.bf16.xpose.msra.mxu0 0
      %191 = vmatpush.bf16.xpose.msra.mxu0 0
      %192 = vmatpush.bf16.xpose.msra.mxu0 0
      %193 = vmatpush.bf16.xpose.msra.mxu0 0
      %194 = vmatpush.bf16.xpose.msra.mxu0 0
      %195 = vmatpush.bf16.xpose.msra.mxu0 %v186
      %196 = vmatmul.bf16.gmra.mxu0 %v183
      %v197 = vpop.f32.mrf.mxu0
      %v198 = vadd.f32 0.0, %v197
      %v199 = vpop.f32.mrf.mxu0
      %200 = vdwg.mxu0
      %v201 = vsel %vm139, %v198, -inf
      %202 = vmax.xlane.f32.xlu0 %v201
      %v203 = vpop.xlane.xlu0 %202
      %v204 = vsub.f32 %v198, %v203
      %v205 = vmul.f32 %v204, 1.442695
      %v206 = vpow.pop %v205
      %v207 = vsel %vm139, %v206, 0.0
      %208 = vadd.xlane.f32.xlu0 %v207
      %v209 = vpop.xlane.xlu0 %208
      %v210 = vpack.c.bf16 %v206, %v206
      %211 = vrot.lane.b32.xlu0 %v116, 56
      %v212 = vpop.permute.xlu0 %211
      %v214 = vsel %vm152, %v210, 0
      %v217 = vand.u32 %v212, %v159
      %219 = vmatpush.bf16.msra.mxu0 0
      %220 = vmatpush.bf16.msra.mxu0 0
      %221 = vmatpush.bf16.msra.mxu0 0
      %222 = vmatpush.bf16.msra.mxu0 0
      %223 = vmatpush.bf16.msra.mxu0 0
      %224 = vmatpush.bf16.msra.mxu0 0
      %225 = vmatpush.bf16.msra.mxu0 0
      %226 = vmatpush.bf16.msra.mxu0 %v217
      %227 = vmatmul.bf16.gmra.mxu0 %v214
      %v228 = vpop.f32.mrf.mxu0
      %v229 = vadd.f32 0.0, %v228
      %v230 = vpop.f32.mrf.mxu0
      %231 = vdwg.mxu0
      %v232 = vrcp.pop %v209
      %v233 = vmul.f32 %v229, %v232
      %235 = vrot.lane.b32.xlu0 %v233, 8
      %v236 = vpop.permute.xlu0 %235
      %v238 = vsel %vm119, %v177, %v236
      %v239 = vpack.c.bf16 %v238, %v238
      %vm240 = vcmask 124928
      %vm241 = vsmask.f32 2304
      %vm242 = vmand %vm240, %vm241
      %v243 = vld [vmem:[%s111] sm:$0x7]
      %v244 = vsel %vm242, %v239, %v243
      %245 = vst [vmem:[%s111] sm:$0x7] %v244
      %v246 = vld [vmem:[%s107] sm:$0x7]
      %v248 = vunpack.c.l.b16 %v246
      %v249 = vpack.c.b16 %v248, %v248
      %250 = vrot.lane.b32.xlu0 %v249, 112
      %v251 = vpop.permute.xlu0 %250
      %252 = vrot.lane.b32.xlu0 %v249, 80
      %v253 = vpop.permute.xlu0 %252
      %v255 = vsel %vm119, %v251, 0
      %v258 = vsel %vm119, %v253, 0
      %260 = vmatpush.bf16.xpose.msra.mxu0 0
      %261 = vmatpush.bf16.xpose.msra.mxu0 0
      %262 = vmatpush.bf16.xpose.msra.mxu0 0
      %263 = vmatpush.bf16.xpose.msra.mxu0 0
      %264 = vmatpush.bf16.xpose.msra.mxu0 0
      %265 = vmatpush.bf16.xpose.msra.mxu0 0
      %266 = vmatpush.bf16.xpose.msra.mxu0 0
      %267 = vmatpush.bf16.xpose.msra.mxu0 %v258
      %268 = vmatmul.bf16.gmra.mxu0 %v255
      %v269 = vpop.f32.mrf.mxu0
      %v270 = vadd.f32 0.0, %v269
      %v271 = vpop.f32.mrf.mxu0
      %272 = vdwg.mxu0
      %v273 = vsel %vm139, %v270, -inf
      %274 = vmax.xlane.f32.xlu0 %v273
      %v275 = vpop.xlane.xlu0 %274
      %v276 = vsub.f32 %v270, %v275
      %v277 = vmul.f32 %v276, 1.442695
      %v278 = vpow.pop %v277
      %v279 = vsel %vm139, %v278, 0.0
      %280 = vadd.xlane.f32.xlu0 %v279
      %v281 = vpop.xlane.xlu0 %280
      %v282 = vpack.c.bf16 %v278, %v278
      %283 = vrot.lane.b32.xlu0 %v249, 48
      %v284 = vpop.permute.xlu0 %283
      %v286 = vsel %vm152, %v282, 0
      %v289 = vand.u32 %v284, %v159
      %291 = vmatpush.bf16.msra.mxu0 0
      %292 = vmatpush.bf16.msra.mxu0 0
      %293 = vmatpush.bf16.msra.mxu0 0
      %294 = vmatpush.bf16.msra.mxu0 0
      %295 = vmatpush.bf16.msra.mxu0 0
      %296 = vmatpush.bf16.msra.mxu0 0
      %297 = vmatpush.bf16.msra.mxu0 0
      %298 = vmatpush.bf16.msra.mxu0 %v289
      %299 = vmatmul.bf16.gmra.mxu0 %v286
      %v300 = vpop.f32.mrf.mxu0
      %v301 = vadd.f32 0.0, %v300
      %v302 = vpop.f32.mrf.mxu0
      %303 = vdwg.mxu0
      %v304 = vrcp.pop %v281
      %v305 = vmul.f32 %v301, %v304
      %306 = vrot.lane.b32.xlu0 %v249, 104
      %v307 = vpop.permute.xlu0 %306
      %308 = vrot.lane.b32.xlu0 %v249, 72
      %v309 = vpop.permute.xlu0 %308
      %v311 = vsel %vm119, %v307, 0
      %v314 = vsel %vm119, %v309, 0
      %316 = vmatpush.bf16.xpose.msra.mxu0 0
      %317 = vmatpush.bf16.xpose.msra.mxu0 0
      %318 = vmatpush.bf16.xpose.msra.mxu0 0
      %319 = vmatpush.bf16.xpose.msra.mxu0 0
      %320 = vmatpush.bf16.xpose.msra.mxu0 0
      %321 = vmatpush.bf16.xpose.msra.mxu0 0
      %322 = vmatpush.bf16.xpose.msra.mxu0 0
      %323 = vmatpush.bf16.xpose.msra.mxu0 %v314
      %324 = vmatmul.bf16.gmra.mxu0 %v311
      %v325 = vpop.f32.mrf.mxu0
      %v326 = vadd.f32 0.0, %v325
      %v327 = vpop.f32.mrf.mxu0
      %328 = vdwg.mxu0
      %v329 = vsel %vm139, %v326, -inf
      %330 = vmax.xlane.f32.xlu0 %v329
      %v331 = vpop.xlane.xlu0 %330
      %v332 = vsub.f32 %v326, %v331
      %v333 = vmul.f32 %v332, 1.442695
      %v334 = vpow.pop %v333
      %v335 = vsel %vm139, %v334, 0.0
      %336 = vadd.xlane.f32.xlu0 %v335
      %v337 = vpop.xlane.xlu0 %336
      %v338 = vpack.c.bf16 %v334, %v334
      %339 = vrot.lane.b32.xlu0 %v249, 40
      %v340 = vpop.permute.xlu0 %339
      %v342 = vsel %vm152, %v338, 0
      %v345 = vand.u32 %v340, %v159
      %347 = vmatpush.bf16.msra.mxu0 0
      %348 = vmatpush.bf16.msra.mxu0 0
      %349 = vmatpush.bf16.msra.mxu0 0
      %350 = vmatpush.bf16.msra.mxu0 0
      %351 = vmatpush.bf16.msra.mxu0 0
      %352 = vmatpush.bf16.msra.mxu0 0
      %353 = vmatpush.bf16.msra.mxu0 0
      %354 = vmatpush.bf16.msra.mxu0 %v345
      %355 = vmatmul.bf16.gmra.mxu0 %v342
      %v356 = vpop.f32.mrf.mxu0
      %v357 = vadd.f32 0.0, %v356
      %v358 = vpop.f32.mrf.mxu0
      %359 = vdwg.mxu0
      %v360 = vrcp.pop %v337
      %v361 = vmul.f32 %v357, %v360
      %363 = vrot.lane.b32.xlu0 %v361, 8
      %v364 = vpop.permute.xlu0 %363
      %v366 = vsel %vm119, %v305, %v364
      %v367 = vpack.c.bf16 %v366, %v366
      %369 = vrot.lane.b32.xlu0 %v367, 16
      %v370 = vpop.permute.xlu0 %369
      %vm372 = vcmask 256128
      %vm373 = vmand %vm372, %vm241
      %v374 = vld [vmem:[%s111] sm:$0x7]
      %v375 = vsel %vm373, %v370, %v374
      %376 = vst [vmem:[%s111] sm:$0x7] %v375
      %p377 = scmp.lt.s32.totalorder %s12, 1
      %s378 = scalar_select %p377, %s12, 1
      %s379 = smul.addr %s378, 4
      %s380 = scalar_lea.vmem %s1, %s379
      // Predicated region
      $region25: #{vit_image_retrieval_forward.14} parent=23 // pred_check
        %p381 = pneg %p56
      $region26: #{vit_image_retrieval_forward.14} parent=23 // pred_check_branch
        %383 = sbr.rel (%p381) target = $region28
      $region27: #{vit_image_retrieval_forward.14} parent=23 // pred_region
        _
      $region28: #{vit_image_retrieval_forward.14} parent=23 // pred_fallthru
        _
    $region24: #{vit_image_retrieval_forward.14} parent=5 // pred_fallthru
      _
    %p384 = scmp.le.s32.totalorder 2, %s7
    // Predicated region
    $region29: #{vit_image_retrieval_forward.14} parent=5 // pred_check
      %p385 = pneg %p384
    $region30: #{vit_image_retrieval_forward.14} parent=5 // pred_check_branch
      %387 = sbr.rel (%p385) target = $region32
    $region31: #{vit_image_retrieval_forward.14} parent=5 // pred_region
      %s388 = ssub.s32 %s7, 2
      // Predicated region
      $region33: #{vit_image_retrieval_forward.14} parent=31 // pred_check
        %p389 = pneg %p62
      $region34: #{vit_image_retrieval_forward.14} parent=31 // pred_check_branch
        %391 = sbr.rel (%p389) target = $region36
      $region35: #{vit_image_retrieval_forward.14} parent=31 // pred_region
        %p392 = scmp.lt.s32.totalorder %s13, 1
        %s393 = scalar_select %p392, %s13, 1
        %s394 = smul.addr %s393, 4
        %s395 = scalar_lea.vmem %s1, %s394
      $region36: #{vit_image_retrieval_forward.14} parent=31 // pred_fallthru
        _
    $region32: #{vit_image_retrieval_forward.14} parent=5 // pred_fallthru
      _
  $region6: #{vit_image_retrieval_forward.14} parent=0 // loop_footer
    %s11 = sadd.s32 1, %s7
  $region7: #{vit_image_retrieval_forward.14} parent=0 // loop_footer_branch
    %6 = sbr.rel target = $region3
  $region8: #{vit_image_retrieval_forward.14} parent=0 // loop_exit
    _

// kernel: vit_image_retrieval_forward.17
$region0: #{vit_image_retrieval_forward.17}
  #allocation0 [shape = 'u32[]', space=smem, size = 0x4, offset = 0x4, fixed_abs, tag = 'smem constant byte address 0x4 - core index']
  #allocation1 [shape = 'u32[72,128]{1,0:T(1,128)}', space=vmem, size = 0x9000, scoped, tag = 'internal scratch']
  %s0 = inlined_call_operand.vmem [shape: bf16[16,64], index: 0, kind: input, shape index: {}]
  %s1 = inlined_call_operand.vmem [shape: bf16[64,128], index: 1, kind: input, shape index: {}]
  %s2 = inlined_call_operand.vmem [shape: f32[1,128], index: 2, kind: input, shape index: {}]
  %s3 = inlined_call_operand.vmem [shape: bf16[16,128], index: 3, kind: input, shape index: {}]
  %s4 = inlined_call_operand.vmem [shape: bf16[16,128], index: 4, kind: output, shape index: {}]
  %s5 = sld [smem:[#allocation0]]
  $region26: #{vit_image_retrieval_forward.17} parent=0
    _
  %s7 = ssub.s32 1, %s5
  %s8 = scalar_select 0, %s7, %s5
  // Predicated region
  $region2: #{vit_image_retrieval_forward.17} parent=0 // pred_check
    _
  $region3: #{vit_image_retrieval_forward.17} parent=0 // pred_check_branch
    %10 = sbr.rel (0) target = $region5
  $region4: #{vit_image_retrieval_forward.17} parent=0 // pred_region
    _
  $region5: #{vit_image_retrieval_forward.17} parent=0 // pred_fallthru
    _
  // Predicated region
  $region6: #{vit_image_retrieval_forward.17} parent=0 // pred_check
    _
  $region7: #{vit_image_retrieval_forward.17} parent=0 // pred_check_branch
    %12 = sbr.rel (0) target = $region9
  $region8: #{vit_image_retrieval_forward.17} parent=0 // pred_region
    _
  $region9: #{vit_image_retrieval_forward.17} parent=0 // pred_fallthru
    _
  // Predicated region
  $region10: #{vit_image_retrieval_forward.17} parent=0 // pred_check
    _
  $region11: #{vit_image_retrieval_forward.17} parent=0 // pred_check_branch
    %14 = sbr.rel (0) target = $region13
  $region12: #{vit_image_retrieval_forward.17} parent=0 // pred_region
    _
  $region13: #{vit_image_retrieval_forward.17} parent=0 // pred_fallthru
    _
  // Predicated region
  $region14: #{vit_image_retrieval_forward.17} parent=0 // pred_check
    _
  $region15: #{vit_image_retrieval_forward.17} parent=0 // pred_check_branch
    %16 = sbr.rel (0) target = $region17
  $region16: #{vit_image_retrieval_forward.17} parent=0 // pred_region
    _
  $region17: #{vit_image_retrieval_forward.17} parent=0 // pred_fallthru
    _
  %v18 = vld [vmem:[%s0] sm:$0xf]
  %v19 = vld [vmem:[%s0 + $0x4] sm:$0xf]
  %v20 = vld [vmem:[%s1] sm:$0xf]
  %v21 = vld [vmem:[%s1 + $0x4] sm:$0xf]
  %v22 = vld [vmem:[%s1 + $0x8] sm:$0xf]
  %v23 = vld [vmem:[%s1 + $0xc] sm:$0xf]
  %v24 = vld [vmem:[%s1 + $0x10] sm:$0xf]
  %v25 = vld [vmem:[%s1 + $0x14] sm:$0xf]
  %v26 = vld [vmem:[%s1 + $0x18] sm:$0xf]
  %v27 = vld [vmem:[%s1 + $0x1c] sm:$0xf]
  %v28 = vld [vmem:[%s2] sm:$0x1]
  %v30 = vperm.slane %v28, 0
  %v34 = vunpack.c.l.b16 %v18
  %v35 = vunpack.c.l.b16 %v19
  %v36 = vpack.c.b16 %v35, %v34
  %v45 = vunpack.c.l.b16 %v20
  %v46 = vunpack.c.l.b16 %v21
  %v47 = vunpack.c.l.b16 %v22
  %v48 = vunpack.c.l.b16 %v23
  %v49 = vunpack.c.l.b16 %v24
  %v50 = vunpack.c.l.b16 %v25
  %v51 = vunpack.c.l.b16 %v26
  %v52 = vunpack.c.l.b16 %v27
  %v53 = vpack.c.b16 %v46, %v45
  %v54 = vpack.c.b16 %v48, %v47
  %v55 = vpack.c.b16 %v50, %v49
  %v56 = vpack.c.b16 %v52, %v51
  %vm61 = vcmask 523264
  %v63 = vsel %vm61, %v36, 0
  %65 = vmatpush.bf16.msra.mxu0 0
  %66 = vmatpush.bf16.msra.mxu0 0
  %67 = vmatpush.bf16.msra.mxu0 0
  %68 = vmatpush.bf16.msra.mxu0 0
  %69 = vmatpush.bf16.msra.mxu0 %v56
  %70 = vmatpush.bf16.msra.mxu0 %v55
  %71 = vmatpush.bf16.msra.mxu0 %v54
  %72 = vmatpush.bf16.msra.mxu0 %v53
  %73 = vmatmul.bf16.gmra.mxu0 %v63
  %v74 = vpop.f32.mrf.mxu0
  %v75 = vadd.f32 %v30, %v74
  %v76 = vpop.f32.mrf.mxu0
  %v77 = vadd.f32 %v30, %v76
  %78 = vdwg.mxu0
  %v79 = vld [vmem:[%s3] sm:$0xf]
  %v80 = vld [vmem:[%s3 + $0x4] sm:$0xf]
  %v81 = vunpack.c.l.bf16 %v79
  %v82 = vunpack.c.l.bf16 %v80
  %v83 = vadd.f32 %v75, %v81
  %v84 = vadd.f32 %v77, %v82
  %v85 = vpack.c.bf16 %v83, %v83
  %v86 = vpack.c.bf16 %v84, %v84
  %87 = vst [vmem:[%s4] sm:$0xf] %v85
  %88 = vst [vmem:[%s4 + $0x4] sm:$0xf] %v86
  // Predicated region
  $region18: #{vit_image_retrieval_forward.17} parent=0 // pred_check
    _
  $region19: #{vit_image_retrieval_forward.17} parent=0 // pred_check_branch
    %90 = sbr.rel (0) target = $region21
  $region20: #{vit_image_retrieval_forward.17} parent=0 // pred_region
    _
  $region21: #{vit_image_retrieval_forward.17} parent=0 // pred_fallthru
    _
  // Predicated region
  $region22: #{vit_image_retrieval_forward.17} parent=0 // pred_check
    _
  $region23: #{vit_image_retrieval_forward.17} parent=0 // pred_check_branch
    %92 = sbr.rel (0) target = $region25
  $region24: #{vit_image_retrieval_forward.17} parent=0 // pred_region
    _
  $region25: #{vit_image_retrieval_forward.17} parent=0 // pred_fallthru
    _

// kernel: vit_image_retrieval_forward.16
$region0: #{vit_image_retrieval_forward.16}
  #allocation0 [shape = 'u32[]', space=smem, size = 0x4, offset = 0x4, fixed_abs, tag = 'smem constant byte address 0x4 - core index']
  #allocation1 [shape = 'u32[72,128]{1,0:T(1,128)}', space=vmem, size = 0x9000, scoped, tag = 'internal scratch']
  %s0 = inlined_call_operand.vmem [shape: bf16[16,32], index: 0, kind: input, shape index: {}]
  %s1 = inlined_call_operand.vmem [shape: bf16[32,128], index: 1, kind: input, shape index: {}]
  %s2 = inlined_call_operand.vmem [shape: f32[1,128], index: 2, kind: input, shape index: {}]
  %s3 = inlined_call_operand.vmem [shape: f32[1,32], index: 3, kind: input, shape index: {}]
  %s4 = inlined_call_operand.vmem [shape: f32[1,32], index: 4, kind: input, shape index: {}]
  %s5 = inlined_call_operand.vmem [shape: bf16[16,128], index: 5, kind: output, shape index: {}]
  %s6 = sld [smem:[#allocation0]]
  $region30: #{vit_image_retrieval_forward.16} parent=0
    _
  %s8 = ssub.s32 1, %s6
  %s9 = scalar_select 0, %s8, %s6
  // Predicated region
  $region2: #{vit_image_retrieval_forward.16} parent=0 // pred_check
    _
  $region3: #{vit_image_retrieval_forward.16} parent=0 // pred_check_branch
    %11 = sbr.rel (0) target = $region5
  $region4: #{vit_image_retrieval_forward.16} parent=0 // pred_region
    _
  $region5: #{vit_image_retrieval_forward.16} parent=0 // pred_fallthru
    _
  // Predicated region
  $region6: #{vit_image_retrieval_forward.16} parent=0 // pred_check
    _
  $region7: #{vit_image_retrieval_forward.16} parent=0 // pred_check_branch
    %13 = sbr.rel (0) target = $region9
  $region8: #{vit_image_retrieval_forward.16} parent=0 // pred_region
    _
  $region9: #{vit_image_retrieval_forward.16} parent=0 // pred_fallthru
    _
  // Predicated region
  $region10: #{vit_image_retrieval_forward.16} parent=0 // pred_check
    _
  $region11: #{vit_image_retrieval_forward.16} parent=0 // pred_check_branch
    %15 = sbr.rel (0) target = $region13
  $region12: #{vit_image_retrieval_forward.16} parent=0 // pred_region
    _
  $region13: #{vit_image_retrieval_forward.16} parent=0 // pred_fallthru
    _
  // Predicated region
  $region14: #{vit_image_retrieval_forward.16} parent=0 // pred_check
    _
  $region15: #{vit_image_retrieval_forward.16} parent=0 // pred_check_branch
    %17 = sbr.rel (0) target = $region17
  $region16: #{vit_image_retrieval_forward.16} parent=0 // pred_region
    _
  $region17: #{vit_image_retrieval_forward.16} parent=0 // pred_fallthru
    _
  // Predicated region
  $region18: #{vit_image_retrieval_forward.16} parent=0 // pred_check
    _
  $region19: #{vit_image_retrieval_forward.16} parent=0 // pred_check_branch
    %19 = sbr.rel (0) target = $region21
  $region20: #{vit_image_retrieval_forward.16} parent=0 // pred_region
    _
  $region21: #{vit_image_retrieval_forward.16} parent=0 // pred_fallthru
    _
  %v21 = vld [vmem:[%s0] sm:$0xf]
  %v22 = vld [vmem:[%s0 + $0x4] sm:$0xf]
  %v23 = vunpack.c.l.bf16 %v21
  %v24 = vunpack.c.l.bf16 %v22
  %vm25 = vcmask 261120
  %v26 = vsel %vm25, %v23, 0.0
  %27 = vadd.xlane.f32.xlu0 %v26
  %v28 = vpop.xlane.xlu0 %27
  %v29 = vsel %vm25, %v24, 0.0
  %30 = vadd.xlane.f32.xlu0 %v29
  %v31 = vpop.xlane.xlu0 %30
  %v32 = vrcp.pop 32.0
  %v33 = vmul.f32 32.0, %v32
  %v34 = vsub.f32 1.0, %v33
  %v35 = vmul.f32 %v32, %v34
  %v36 = vadd.f32 %v32, %v35
  %vm37 = vweird.f32 %v32
  %v38 = vsel %vm37, %v32, %v36
  %v39 = vmul.f32 %v28, %v38
  %v40 = vmul.f32 %v31, %v38
  %v41 = vsub.f32 %v23, %v39
  %v42 = vsub.f32 %v24, %v40
  %v43 = vmul.f32 %v41, %v41
  %v44 = vmul.f32 %v42, %v42
  %v45 = vsel %vm25, %v43, 0.0
  %46 = vadd.xlane.f32.xlu0 %v45
  %v47 = vpop.xlane.xlu0 %46
  %v48 = vsel %vm25, %v44, 0.0
  %49 = vadd.xlane.f32.xlu0 %v48
  %v50 = vpop.xlane.xlu0 %49
  %v51 = vmul.f32 %v47, %v38
  %v52 = vmul.f32 %v50, %v38
  %v53 = vadd.f32 %v51, 1e-06
  %v54 = vadd.f32 %v52, 1e-06
  %v55 = vrsqrt.pop %v53
  %v56 = vmul.f32 %v55, %v53
  %v57 = vmul.f32 %v56, %v55
  %v58 = vmul.f32 0.5, %v57
  %v59 = vsub.f32 1.5, %v58
  %v60 = vmul.f32 %v55, %v59
  %vm61 = vweird.f32 %v53
  %vm62 = vweird.f32 %v55
  %vm63 = vmor %vm61, %vm62
  %v64 = vsel %vm63, %v55, %v60
  %v65 = vrsqrt.pop %v54
  %v66 = vmul.f32 %v65, %v54
  %v67 = vmul.f32 %v66, %v65
  %v68 = vmul.f32 0.5, %v67
  %v69 = vsub.f32 1.5, %v68
  %v70 = vmul.f32 %v65, %v69
  %vm71 = vweird.f32 %v54
  %vm72 = vweird.f32 %v65
  %vm73 = vmor %vm71, %vm72
  %v74 = vsel %vm73, %v65, %v70
  %v75 = vmul.f32 %v41, %v64
  %v76 = vmul.f32 %v42, %v74
  %v77 = vld [vmem:[%s3] sm:$0x1]
  %v79 = vperm.slane %v77, 0
  %v81 = vmul.f32 %v75, %v79
  %v82 = vmul.f32 %v76, %v79
  %v83 = vld [vmem:[%s4] sm:$0x1]
  %v85 = vperm.slane %v83, 0
  %v87 = vadd.f32 %v81, %v85
  %v88 = vadd.f32 %v82, %v85
  %v89 = vpack.c.bf16 %v88, %v87
  %v90 = vld [vmem:[%s1] sm:$0xf]
  %v91 = vld [vmem:[%s1 + $0x4] sm:$0xf]
  %v92 = vld [vmem:[%s1 + $0x8] sm:$0xf]
  %v93 = vld [vmem:[%s1 + $0xc] sm:$0xf]
  %v94 = vld [vmem:[%s2] sm:$0x1]
  %v96 = vperm.slane %v94, 0
  %v102 = vunpack.c.l.b16 %v90
  %v103 = vunpack.c.l.b16 %v91
  %v104 = vunpack.c.l.b16 %v92
  %v105 = vunpack.c.l.b16 %v93
  %v106 = vpack.c.b16 %v103, %v102
  %v107 = vpack.c.b16 %v105, %v104
  %v111 = vsel %vm25, %v89, 0
  %113 = vmatpush.bf16.msra.mxu0 0
  %114 = vmatpush.bf16.msra.mxu0 0
  %115 = vmatpush.bf16.msra.mxu0 0
  %116 = vmatpush.bf16.msra.mxu0 0
  %117 = vmatpush.bf16.msra.mxu0 0
  %118 = vmatpush.bf16.msra.mxu0 0
  %119 = vmatpush.bf16.msra.mxu0 %v107
  %120 = vmatpush.bf16.msra.mxu0 %v106
  %121 = vmatmul.bf16.gmra.mxu0 %v111
  %v122 = vpop.f32.mrf.mxu0
  %v123 = vadd.f32 %v96, %v122
  %v124 = vpop.f32.mrf.mxu0
  %v125 = vadd.f32 %v96, %v124
  %126 = vdwg.mxu0
  %v127 = vmul.f32 %v123, %v123
  %v128 = vmul.f32 %v125, %v125
  %v129 = vmul.f32 %v123, %v127
  %v130 = vmul.f32 %v125, %v128
  %v131 = vmul.f32 %v129, 0.044715
  %v132 = vmul.f32 %v130, 0.044715
  %v133 = vadd.f32 %v123, %v131
  %v134 = vadd.f32 %v125, %v132
  %v135 = vmul.f32 %v133, 0.7978846
  %v136 = vmul.f32 %v134, 0.7978846
  %v137 = vtanh.pop %v135
  %v138 = vtanh.pop %v136
  %v139 = vadd.f32 %v137, 1.0
  %v140 = vadd.f32 %v138, 1.0
  %v141 = vmul.f32 %v139, 0.5
  %v142 = vmul.f32 %v140, 0.5
  %v143 = vmul.f32 %v123, %v141
  %v144 = vmul.f32 %v125, %v142
  %v145 = vpack.c.bf16 %v143, %v143
  %v146 = vpack.c.bf16 %v144, %v144
  %147 = vst [vmem:[%s5] sm:$0xf] %v145
  %148 = vst [vmem:[%s5 + $0x4] sm:$0xf] %v146
  // Predicated region
  $region22: #{vit_image_retrieval_forward.16} parent=0 // pred_check
    _
  $region23: #{vit_image_retrieval_forward.16} parent=0 // pred_check_branch
    %150 = sbr.rel (0) target = $region25
  $region24: #{vit_image_retrieval_forward.16} parent=0 // pred_region
    _
  $region25: #{vit_image_retrieval_forward.16} parent=0 // pred_fallthru
    _
  // Predicated region
  $region26: #{vit_image_retrieval_forward.16} parent=0 // pred_check
    _
  $region27: #{vit_image_retrieval_forward.16} parent=0 // pred_check_branch
    %152 = sbr.rel (0) target = $region29
  $region28: #{vit_image_retrieval_forward.16} parent=0 // pred_region
    _
  $region29: #{vit_image_retrieval_forward.16} parent=0 // pred_fallthru
    _

// kernel: vit_image_retrieval_forward.23
$region0: #{vit_image_retrieval_forward.23}
  #allocation0 [shape = 'u32[]', space=smem, size = 0x4, offset = 0x4, fixed_abs, tag = 'smem constant byte address 0x4 - core index']
  #allocation1 [shape = 'u32[72,128]{1,0:T(1,128)}', space=vmem, size = 0x9000, scoped, tag = 'internal scratch']
  #allocation2 [shape = 'f32[8,32]{1,0:T(8,128)}', space=vmem, size = 0x1000, scoped, tag = 'scratch operand']
  %s0 = inlined_call_operand.vmem [shape: bf16[8,32], index: 0, kind: input, shape index: {}]
  %s1 = inlined_call_operand.vmem [shape: f32[1,32], index: 1, kind: input, shape index: {}]
  %s2 = inlined_call_operand.vmem [shape: f32[1,32], index: 2, kind: input, shape index: {}]
  %s3 = inlined_call_operand.vmem [shape: bf16[32,128], index: 3, kind: input, shape index: {}]
  %s4 = inlined_call_operand.vmem [shape: f32[1,128], index: 4, kind: input, shape index: {}]
  %s5 = inlined_call_operand.vmem [shape: f32[8,32], index: 5, kind: output, shape index: {0}]
  %s6 = inlined_call_operand.vmem [shape: f32[8,128], index: 6, kind: output, shape index: {1}]
  %7 = xla_tuple %s5, %s6
  %s8 = sld [smem:[#allocation0]]
  $region42: #{vit_image_retrieval_forward.23} parent=0
    _
  %s10 = ssub.s32 1, %s8
  %s11 = scalar_select 0, %s10, %s8
  // Predicated region
  $region2: #{vit_image_retrieval_forward.23} parent=0 // pred_check
    _
  $region3: #{vit_image_retrieval_forward.23} parent=0 // pred_check_branch
    %13 = sbr.rel (0) target = $region5
  $region4: #{vit_image_retrieval_forward.23} parent=0 // pred_region
    _
  $region5: #{vit_image_retrieval_forward.23} parent=0 // pred_fallthru
    _
  // Predicated region
  $region6: #{vit_image_retrieval_forward.23} parent=0 // pred_check
    _
  $region7: #{vit_image_retrieval_forward.23} parent=0 // pred_check_branch
    %15 = sbr.rel (0) target = $region9
  $region8: #{vit_image_retrieval_forward.23} parent=0 // pred_region
    _
  $region9: #{vit_image_retrieval_forward.23} parent=0 // pred_fallthru
    _
  // Predicated region
  $region10: #{vit_image_retrieval_forward.23} parent=0 // pred_check
    _
  $region11: #{vit_image_retrieval_forward.23} parent=0 // pred_check_branch
    %17 = sbr.rel (0) target = $region13
  $region12: #{vit_image_retrieval_forward.23} parent=0 // pred_region
    _
  $region13: #{vit_image_retrieval_forward.23} parent=0 // pred_fallthru
    _
  // Predicated region
  $region14: #{vit_image_retrieval_forward.23} parent=0 // pred_check
    _
  $region15: #{vit_image_retrieval_forward.23} parent=0 // pred_check_branch
    %19 = sbr.rel (0) target = $region17
  $region16: #{vit_image_retrieval_forward.23} parent=0 // pred_region
    _
  $region17: #{vit_image_retrieval_forward.23} parent=0 // pred_fallthru
    _
  // Predicated region
  $region18: #{vit_image_retrieval_forward.23} parent=0 // pred_check
    _
  $region19: #{vit_image_retrieval_forward.23} parent=0 // pred_check_branch
    %21 = sbr.rel (0) target = $region21
  $region20: #{vit_image_retrieval_forward.23} parent=0 // pred_region
    _
  $region21: #{vit_image_retrieval_forward.23} parent=0 // pred_fallthru
    _
  %p23 = scmp.eq.s32.totalorder 0, 0
  // Predicated region
  $region22: #{vit_image_retrieval_forward.23} parent=0 // pred_check
    %p24 = pneg %p23
  $region23: #{vit_image_retrieval_forward.23} parent=0 // pred_check_branch
    %26 = sbr.rel (%p24) target = $region25
  $region24: #{vit_image_retrieval_forward.23} parent=0 // pred_region
    %v27 = vld [vmem:[%s0] sm:$0xf]
    %v28 = vunpack.c.l.bf16 %v27
    %vm29 = vcmask 261120
    %v30 = vsel %vm29, %v28, 0.0
    %31 = vadd.xlane.f32.xlu0 %v30
    %v32 = vpop.xlane.xlu0 %31
    %v33 = vrcp.pop 32.0
    %v34 = vmul.f32 32.0, %v33
    %v35 = vsub.f32 1.0, %v34
    %v36 = vmul.f32 %v33, %v35
    %v37 = vadd.f32 %v33, %v36
    %vm38 = vweird.f32 %v33
    %v39 = vsel %vm38, %v33, %v37
    %v40 = vmul.f32 %v32, %v39
    %v41 = vsub.f32 %v28, %v40
    %v42 = vmul.f32 %v41, %v41
    %v43 = vsel %vm29, %v42, 0.0
    %44 = vadd.xlane.f32.xlu0 %v43
    %v45 = vpop.xlane.xlu0 %44
    %v46 = vmul.f32 %v45, %v39
    %v47 = vadd.f32 %v46, 1e-06
    %v48 = vrsqrt.pop %v47
    %v49 = vmul.f32 %v48, %v47
    %v50 = vmul.f32 %v49, %v48
    %v51 = vmul.f32 0.5, %v50
    %v52 = vsub.f32 1.5, %v51
    %v53 = vmul.f32 %v48, %v52
    %vm54 = vweird.f32 %v47
    %vm55 = vweird.f32 %v48
    %vm56 = vmor %vm54, %vm55
    %v57 = vsel %vm56, %v48, %v53
    %v58 = vmul.f32 %v41, %v57
    %v59 = vld [vmem:[%s1] sm:$0x1]
    %v61 = vperm.slane %v59, 0
    %v63 = vmul.f32 %v58, %v61
    %v64 = vld [vmem:[%s2] sm:$0x1]
    %v66 = vperm.slane %v64, 0
    %v68 = vadd.f32 %v63, %v66
    %69 = vst.msk [vmem:[#allocation2] sm:$0xff] %vm29, %v68
    %v70 = vmul.f32 %v68, %v68
    %v71 = vsel %vm29, %v70, 0.0
    %72 = vadd.xlane.f32.xlu0 %v71
    %v73 = vpop.xlane.xlu0 %72
    %v74 = vrsqrt.pop %v73
    %v75 = vmul.f32 %v74, %v73
    %v76 = vmul.f32 %v75, %v74
    %v77 = vmul.f32 0.5, %v76
    %v78 = vsub.f32 1.5, %v77
    %v79 = vmul.f32 %v74, %v78
    %v80 = vmul.f32 %v73, %v79
    %vm81 = vcmp.eq.f32.partialorder %v73, inf
    %v82 = vsel %vm81, %v73, %v80
    %vm83 = vcmp.eq.f32.partialorder %v73, 0.0
    %v84 = vand.u32 %v73, 2147483648
    %v85 = vsel %vm83, %v84, %v82
    %v86 = vadd.f32 %v85, 1e-06
    %v87 = vrcp.pop %v86
    %v88 = vmul.f32 %v86, %v87
    %v89 = vsub.f32 1.0, %v88
    %v90 = vmul.f32 %v87, %v89
    %v91 = vadd.f32 %v87, %v90
    %vm92 = vweird.f32 %v86
    %vm93 = vweird.f32 %v87
    %vm94 = vmor %vm92, %vm93
    %v95 = vsel %vm94, %v87, %v91
    %v96 = vand.u32 2147483647, %v86
    %vm97 = vcmp.eq.f32.partialorder %v96, 8.507059e+37
    %v98 = vand.u32 %v86, 2147483648
    %v99 = vor.u32 1.1754944e-38, %v98
    %v100 = vsel %vm97, %v99, %v95
    %v101 = vmul.f32 %v68, %v100
    %102 = vst.msk [vmem:[%s5] sm:$0xff] %vm29, %v101
  $region25: #{vit_image_retrieval_forward.23} parent=0 // pred_fallthru
    _
  %v103 = vld [vmem:[#allocation2] sm:$0xff]
  %v104 = vpack.c.bf16 %v103, %v103
  %v105 = vld [vmem:[%s3] sm:$0xf]
  %v106 = vld [vmem:[%s3 + $0x4] sm:$0xf]
  %v107 = vld [vmem:[%s3 + $0x8] sm:$0xf]
  %v108 = vld [vmem:[%s3 + $0xc] sm:$0xf]
  %v109 = vld [vmem:[%s4] sm:$0x1]
  %v111 = vperm.slane %v109, 0
  %v117 = vunpack.c.l.b16 %v105
  %v118 = vunpack.c.l.b16 %v106
  %v119 = vunpack.c.l.b16 %v107
  %v120 = vunpack.c.l.b16 %v108
  %v121 = vpack.c.b16 %v118, %v117
  %v122 = vpack.c.b16 %v120, %v119
  %vm125 = vcmask 261120
  %v127 = vsel %vm125, %v104, 0
  %129 = vmatpush.bf16.msra.mxu0 0
  %130 = vmatpush.bf16.msra.mxu0 0
  %131 = vmatpush.bf16.msra.mxu0 0
  %132 = vmatpush.bf16.msra.mxu0 0
  %133 = vmatpush.bf16.msra.mxu0 0
  %134 = vmatpush.bf16.msra.mxu0 0
  %135 = vmatpush.bf16.msra.mxu0 %v122
  %136 = vmatpush.bf16.msra.mxu0 %v121
  %137 = vmatmul.bf16.gmra.mxu0 %v127
  %v138 = vpop.f32.mrf.mxu0
  %v139 = vadd.f32 %v111, %v138
  %v140 = vpop.f32.mrf.mxu0
  %141 = vdwg.mxu0
  %142 = vst [vmem:[%s6] sm:$0xff] %v139
  // Predicated region
  $region26: #{vit_image_retrieval_forward.23} parent=0 // pred_check
    _
  $region27: #{vit_image_retrieval_forward.23} parent=0 // pred_check_branch
    %144 = sbr.rel (0) target = $region29
  $region28: #{vit_image_retrieval_forward.23} parent=0 // pred_region
    _
  $region29: #{vit_image_retrieval_forward.23} parent=0 // pred_fallthru
    _
  // Predicated region
  $region30: #{vit_image_retrieval_forward.23} parent=0 // pred_check
    _
  $region31: #{vit_image_retrieval_forward.23} parent=0 // pred_check_branch
    %146 = sbr.rel (0) target = $region33
  $region32: #{vit_image_retrieval_forward.23} parent=0 // pred_region
    _
  $region33: #{vit_image_retrieval_forward.23} parent=0 // pred_fallthru
    _
  // Predicated region
  $region34: #{vit_image_retrieval_forward.23} parent=0 // pred_check
    _
  $region35: #{vit_image_retrieval_forward.23} parent=0 // pred_check_branch
    %148 = sbr.rel (0) target = $region37
  $region36: #{vit_image_retrieval_forward.23} parent=0 // pred_region
    _
  $region37: #{vit_image_retrieval_forward.23} parent=0 // pred_fallthru
    _
  // Predicated region
  $region38: #{vit_image_retrieval_forward.23} parent=0 // pred_check
    _
  $region39: #{vit_image_retrieval_forward.23} parent=0 // pred_check_branch
    %150 = sbr.rel (0) target = $region41
  $region40: #{vit_image_retrieval_forward.23} parent=0 // pred_region
    _
  $region41: #{vit_image_retrieval_forward.23} parent=0 // pred_fallthru
    _

</llo_original>
